<compile_context>
chip_gen: v5e
topology: v5e:2x2
jax: 0.10.0
libtpu: 0.0.40
codegen_flags: <defaults>
</compile_context>

<pallas_src>
import functools

import jax
import jax.numpy as jnp
from jax import lax
from jax.experimental import pallas as pl
from jax.experimental.pallas import tpu as pltpu


# ----------------------------- in-kernel helpers -----------------------------

def _layernorm(x, gamma, beta, eps):
    mu = jnp.mean(x, axis=-1, keepdims=True)
    var = jnp.mean((x - mu) ** 2, axis=-1, keepdims=True)
    return (x - mu) * lax.rsqrt(var + eps) * gamma + beta


def _softmax(x):
    m = jnp.max(x, axis=-1, keepdims=True)
    e = jnp.exp(x - m)
    return e / jnp.sum(e, axis=-1, keepdims=True)


# ------------------------------- fused kernel --------------------------------

def moe_layer_kernel(
    # inputs (weights pre-fused / pre-transposed in the wrapper)
    x_ref,                                   # (S, D)
    g1_ref, bt1_ref, g2_ref, bt2_ref,        # LayerNorm affine, (1, D) each
    wq_ref, bq_ref,                          # fused query proj: (D, D), (1, D)
    wk_ref, bk_ref,                          # fused key   proj: (D, D), (1, D)
    wv_ref, bv_ref,                          # fused value proj: (D, D), (1, D)
    ow_ref, ob_ref,                          # attn out proj (transposed): (D, D), (1, D)
    swt_ref, sb_ref,                         # router (transposed): (D, E), (1, E)
    w1t_ref, b1_ref,                         # expert e fc1: (D, F), (1, F)   [streamed]
    w2t_ref, b2_ref,                         # expert e fc2: (F, D), (1, D)   [streamed]
    # output
    o_ref,                                   # (S, D), resident across the expert grid axis
    # scratch
    h2_sc, gate_sc, acc_sc,
    *, n_heads, n_experts, eps, norm_first,
):
    e = pl.program_id(0)

    # ---- grid step 0: attention block + router (expert-1 weights prefetch underneath) ----
    @pl.when(e == 0)
    def _():
        x = x_ref[...]
        S, D = x.shape
        Dh = D // n_heads

        h = _layernorm(x, g1_ref[...], bt1_ref[...], eps) if norm_first else x

        # MHALayer pre-projections folded into in_proj (W_key->q, W_query->k, W_value->v).
        q = jnp.dot(h, wq_ref[...], preferred_element_type=jnp.float32) + bq_ref[...]
        k = jnp.dot(h, wk_ref[...], preferred_element_type=jnp.float32) + bk_ref[...]
        v = jnp.dot(h, wv_ref[...], preferred_element_type=jnp.float32) + bv_ref[...]

        # Additive causal mask built in-kernel (pure index arithmetic, no HBM traffic).
        row = lax.broadcasted_iota(jnp.int32, (S, S), 0)
        col = lax.broadcasted_iota(jnp.int32, (S, S), 1)
        mask = jnp.where(col > row, jnp.float32(-1e9), jnp.float32(0.0))

        scale = 1.0 / (Dh ** 0.5)
        head_outs = []
        for hd in range(n_heads):
            sl = slice(hd * Dh, (hd + 1) * Dh)
            scores = lax.dot_general(
                q[:, sl], k[:, sl], (((1,), (1,)), ((), ())),
                preferred_element_type=jnp.float32) * scale + mask
            p = _softmax(scores)
            head_outs.append(jnp.dot(p, v[:, sl], preferred_element_type=jnp.float32))
        # Single concatenated out-projection (contracting dim D, one MXU pass).
        attn = jnp.dot(jnp.concatenate(head_outs, axis=-1), ow_ref[...],
                       preferred_element_type=jnp.float32) + ob_ref[...]

        if norm_first:
            x1 = x + attn
            h2 = _layernorm(x1, g2_ref[...], bt2_ref[...], eps)
        else:
            x1 = _layernorm(x + attn, g1_ref[...], bt1_ref[...], eps)
            h2 = x1
        h2_sc[...] = h2
        acc_sc[...] = x1                      # residual; expert outputs accumulate on top

        # Router: softmax(Linear(h2)); top_k=1, first index on ties.
        logits = jnp.dot(h2, swt_ref[...], preferred_element_type=jnp.float32) + sb_ref[...]
        probs = _softmax(logits)              # (S, E)
        cidx = lax.broadcasted_iota(jnp.int32, probs.shape, 1)
        maxp = jnp.max(probs, axis=-1, keepdims=True)
        first_max = jnp.min(jnp.where(probs == maxp, cidx, n_experts),
                            axis=-1, keepdims=True)
        gate_sc[...] = jnp.where(cidx == first_max, probs, 0.0)   # masked top-1 gate (S, E)

    # ---- every grid step: one expert's FFN, weights streamed by the pipeline ----
    gate = gate_sc[...]
    cidx = lax.broadcasted_iota(jnp.int32, gate.shape, 1)
    gate_col = jnp.sum(jnp.where(cidx == e, gate, 0.0), axis=-1, keepdims=True)   # (S, 1)
    h2 = h2_sc[...]
    a = jnp.maximum(
        jnp.dot(h2, w1t_ref[...], preferred_element_type=jnp.float32) + b1_ref[...], 0.0)
    y = jnp.dot(a, w2t_ref[...], preferred_element_type=jnp.float32) + b2_ref[...]
    acc_sc[...] = acc_sc[...] + gate_col * y

    # ---- finalize ----
    @pl.when(e == n_experts - 1)
    def _():
        if norm_first:
            o_ref[...] = acc_sc[...]
        else:
            o_ref[...] = _layernorm(acc_sc[...], g2_ref[...], bt2_ref[...], eps)


# --------------------------------- wrapper ------------------------------------

def _fuse_params(params):
    """One-time algebraic fusion + layout prep (plain XLA, outside the kernel)."""
    D = params["wk"].shape[0]
    in_w, in_b = params["in_w"], params["in_b"]          # packed [q; k; v]
    win_q, win_k, win_v = in_w[0:D], in_w[D:2 * D], in_w[2 * D:3 * D]
    bin_q, bin_k, bin_v = in_b[0:D], in_b[D:2 * D], in_b[2 * D:3 * D]

    def fuse(w_outer, b_outer, w_inner, b_inner):
        # x -> (x Wo^T + bo) Wi^T + bi  ==  x @ (Wo^T Wi^T) + (bo Wi^T + bi)
        return w_outer.T @ w_inner.T, (b_outer @ w_inner.T + b_inner)[None, :]

    # MHALayer quirk: query = W_key(x), key = W_query(x), value = W_value(x).
    wq_t, bq_f = fuse(params["wk"], params["bk"], win_q, bin_q)
    wk_t, bk_f = fuse(params["wq"], params["bq"], win_k, bin_k)
    wv_t, bv_f = fuse(params["wv"], params["bv"], win_v, bin_v)

    return dict(
        g1=params["ln1_g"][None, :], bt1=params["ln1_b"][None, :],
        g2=params["ln2_g"][None, :], bt2=params["ln2_b"][None, :],
        wq_t=wq_t, bq=bq_f, wk_t=wk_t, bk=bk_f, wv_t=wv_t, bv=bv_f,
        ow_t=params["out_w"].T, ob=params["out_b"][None, :],
        sw_t=params["sw_w"].T, sb=params["sw_b"][None, :],
        w1_t=jnp.transpose(params["w1"], (0, 2, 1)),     # (E, D, F)
        b1=params["b1"][:, None, :],                     # (E, 1, F)
        w2_t=jnp.transpose(params["w2"], (0, 2, 1)),     # (E, F, D)
        b2=params["b2"][:, None, :],                     # (E, 1, D)
    )


def moe_layer_forward(x, params, *, n_heads, n_experts, eps=1e-5, norm_first=True):
    S, D = x.shape
    E = n_experts
    F = params["w1"].shape[1]
    fp = _fuse_params(params)

    def const_spec(shape):
        nd = len(shape)
        return pl.BlockSpec(shape, lambda *_: (0,) * nd)   # resident across expert steps

    in_specs = [
        const_spec((S, D)),                                       # x
        const_spec((1, D)), const_spec((1, D)),                   # LN1 gamma/beta
        const_spec((1, D)), const_spec((1, D)),                   # LN2 gamma/beta
        const_spec((D, D)), const_spec((1, D)),                   # fused q
        const_spec((D, D)), const_spec((1, D)),                   # fused k
        const_spec((D, D)), const_spec((1, D)),                   # fused v
        const_spec((D, D)), const_spec((1, D)),                   # out proj
        const_spec((D, E)), const_spec((1, E)),                   # router
        pl.BlockSpec((None, D, F), lambda e: (e, 0, 0)),          # expert fc1 W^T (streamed)
        pl.BlockSpec((None, 1, F), lambda e: (e, 0, 0)),          # expert fc1 b
        pl.BlockSpec((None, F, D), lambda e: (e, 0, 0)),          # expert fc2 W^T (streamed)
        pl.BlockSpec((None, 1, D), lambda e: (e, 0, 0)),          # expert fc2 b
    ]

    flops = (3 * 2 * S * D * D           # fused qkv projections
             + 2 * 2 * S * S * D         # attention scores + weighted values
             + 2 * S * D * D             # out projection
             + 2 * S * D * E             # router
             + E * 4 * S * D * F)        # expert FFNs (dense, gate-masked)
    transcendentals = n_heads * S * S + S * E
    bytes_accessed = 4 * (2 * S * D + 4 * D * D + 8 * D + D * E + E
                          + 2 * E * D * F + E * (D + F))
    cost = pl.CostEstimate(flops=flops, transcendentals=transcendentals,
                           bytes_accessed=bytes_accessed)

    kernel = functools.partial(moe_layer_kernel, n_heads=n_heads, n_experts=n_experts,
                               eps=eps, norm_first=norm_first)

    return pl.pallas_call(
        kernel,
        out_shape=jax.ShapeDtypeStruct((S, D), jnp.float32),
        grid_spec=pltpu.PrefetchScalarGridSpec(
            num_scalar_prefetch=0,
            grid=(E,),
            in_specs=in_specs,
            out_specs=pl.BlockSpec((S, D), lambda e: (0, 0)),
            scratch_shapes=[
                pltpu.VMEM((S, D), jnp.float32),    # h2 (MoE input)
                pltpu.VMEM((S, E), jnp.float32),    # masked top-1 gates
                pltpu.VMEM((S, D), jnp.float32),    # output accumulator
            ],
        ),
        compiler_params=pltpu.CompilerParams(
            dimension_semantics=("arbitrary",),     # accumulates across expert steps
            vmem_limit_bytes=32 * 1024 * 1024,
        ),
        cost_estimate=cost,
    )(x,
      fp["g1"], fp["bt1"], fp["g2"], fp["bt2"],
      fp["wq_t"], fp["bq"], fp["wk_t"], fp["bk"], fp["wv_t"], fp["bv"],
      fp["ow_t"], fp["ob"], fp["sw_t"], fp["sb"],
      fp["w1_t"], fp["b1"], fp["w2_t"], fp["b2"])


# ------------------------------- param init -----------------------------------

def init_params(key, d_model, d_ff, n_experts):
    D, F, E = d_model, d_ff, n_experts
    ks = jax.random.split(key, 16)
    s = 0.05
    return {
        # LayerNorms (affine), PyTorch-native shapes.
        "ln1_g": jnp.ones((D,), jnp.float32), "ln1_b": jnp.zeros((D,), jnp.float32),
        "ln2_g": jnp.ones((D,), jnp.float32), "ln2_b": jnp.zeros((D,), jnp.float32),
        # MHALayer projection linears (PyTorch Linear: y = x W^T + b).
        "wk": s * jax.random.normal(ks[0], (D, D), jnp.float32),
        "bk": s * jax.random.normal(ks[1], (D,), jnp.float32),
        "wq": s * jax.random.normal(ks[2], (D, D), jnp.float32),
        "bq": s * jax.random.normal(ks[3], (D,), jnp.float32),
        "wv": s * jax.random.normal(ks[4], (D, D), jnp.float32),
        "bv": s * jax.random.normal(ks[5], (D,), jnp.float32),
        # nn.MultiheadAttention packed in_proj + out_proj.
        "in_w": s * jax.random.normal(ks[6], (3 * D, D), jnp.float32),
        "in_b": s * jax.random.normal(ks[7], (3 * D,), jnp.float32),
        "out_w": s * jax.random.normal(ks[8], (D, D), jnp.float32),
        "out_b": s * jax.random.normal(ks[9], (D,), jnp.float32),
        # Router switch linear.
        "sw_w": s * jax.random.normal(ks[10], (E, D), jnp.float32),
        "sw_b": s * jax.random.normal(ks[11], (E,), jnp.float32),
        # Per-expert FeedForward weights (stacked along expert axis).
        "w1": s * jax.random.normal(ks[12], (E, F, D), jnp.float32),
        "b1": s * jax.random.normal(ks[13], (E, F), jnp.float32),
        "w2": s * jax.random.normal(ks[14], (E, D, F), jnp.float32),
        "b2": s * jax.random.normal(ks[15], (E, D), jnp.float32),
    }


# ----------------------------------- main --------------------------------------

if __name__ == "__main__":
    # config: d_model=32, n_heads=4, d_ff=64, n_experts=4, layer_norm_eps=1e-5,
    #         dropout=0.0 (eval), norm_first=True, seq_len=8, causal attention mask.
    S, D, H, F, E = 8, 32, 4, 64, 4
    eps = 1e-5

    key = jax.random.PRNGKey(0)
    kx, kp = jax.random.split(key)
    x = jax.random.normal(kx, (S, D), jnp.float32)
    params = init_params(kp, D, F, E)

    out = moe_layer_forward(x, params, n_heads=H, n_experts=E, eps=eps, norm_first=True)
    out = jax.block_until_ready(out)
    assert out.shape == (S, D) and out.dtype == jnp.float32
    assert bool(jnp.all(jnp.isfinite(out)))
    print("KERNEL_OK")
</pallas_src>

<mosaic_0001>
module attributes {stable_mosaic.version = 11 : i64} {
  func.func @moe_layer_kernel(%arg0: i32, %arg1: memref<8x32xf32, #tpu.memory_space<vmem>>, %arg2: memref<1x32xf32, #tpu.memory_space<vmem>>, %arg3: memref<1x32xf32, #tpu.memory_space<vmem>>, %arg4: memref<1x32xf32, #tpu.memory_space<vmem>>, %arg5: memref<1x32xf32, #tpu.memory_space<vmem>>, %arg6: memref<32x32xf32, #tpu.memory_space<vmem>>, %arg7: memref<1x32xf32, #tpu.memory_space<vmem>>, %arg8: memref<32x32xf32, #tpu.memory_space<vmem>>, %arg9: memref<1x32xf32, #tpu.memory_space<vmem>>, %arg10: memref<32x32xf32, #tpu.memory_space<vmem>>, %arg11: memref<1x32xf32, #tpu.memory_space<vmem>>, %arg12: memref<32x32xf32, #tpu.memory_space<vmem>>, %arg13: memref<1x32xf32, #tpu.memory_space<vmem>>, %arg14: memref<32x4xf32, #tpu.memory_space<vmem>>, %arg15: memref<1x4xf32, #tpu.memory_space<vmem>>, %arg16: memref<1x32x64xf32, #tpu.memory_space<vmem>>, %arg17: memref<1x1x64xf32, #tpu.memory_space<vmem>>, %arg18: memref<1x64x32xf32, #tpu.memory_space<vmem>>, %arg19: memref<1x1x32xf32, #tpu.memory_space<vmem>>, %arg20: memref<8x32xf32, #tpu.memory_space<vmem>>, %arg21: memref<8x32xf32, #tpu.memory_space<vmem>>, %arg22: memref<8x4xf32, #tpu.memory_space<vmem>>, %arg23: memref<8x32xf32, #tpu.memory_space<vmem>>) attributes {dimension_semantics = [#tpu.dimension_semantics<arbitrary>], iteration_bounds = array<i64: 4>, scalar_prefetch = 0 : i64, scratch_operands = 3 : i64, tpu.core_type = #tpu.core_type<tc>, window_params = [{pipeline_mode = #tpu.pipeline_mode<synchronous>, transform_indices = @transform_0, window_bounds = array<i64: 8, 32>}, {pipeline_mode = #tpu.pipeline_mode<synchronous>, transform_indices = @transform_1, window_bounds = array<i64: 1, 32>}, {pipeline_mode = #tpu.pipeline_mode<synchronous>, transform_indices = @transform_2, window_bounds = array<i64: 1, 32>}, {pipeline_mode = #tpu.pipeline_mode<synchronous>, transform_indices = @transform_3, window_bounds = array<i64: 1, 32>}, {pipeline_mode = #tpu.pipeline_mode<synchronous>, transform_indices = @transform_4, window_bounds = array<i64: 1, 32>}, {pipeline_mode = #tpu.pipeline_mode<synchronous>, transform_indices = @transform_5, window_bounds = array<i64: 32, 32>}, {pipeline_mode = #tpu.pipeline_mode<synchronous>, transform_indices = @transform_6, window_bounds = array<i64: 1, 32>}, {pipeline_mode = #tpu.pipeline_mode<synchronous>, transform_indices = @transform_7, window_bounds = array<i64: 32, 32>}, {pipeline_mode = #tpu.pipeline_mode<synchronous>, transform_indices = @transform_8, window_bounds = array<i64: 1, 32>}, {pipeline_mode = #tpu.pipeline_mode<synchronous>, transform_indices = @transform_9, window_bounds = array<i64: 32, 32>}, {pipeline_mode = #tpu.pipeline_mode<synchronous>, transform_indices = @transform_10, window_bounds = array<i64: 1, 32>}, {pipeline_mode = #tpu.pipeline_mode<synchronous>, transform_indices = @transform_11, window_bounds = array<i64: 32, 32>}, {pipeline_mode = #tpu.pipeline_mode<synchronous>, transform_indices = @transform_12, window_bounds = array<i64: 1, 32>}, {pipeline_mode = #tpu.pipeline_mode<synchronous>, transform_indices = @transform_13, window_bounds = array<i64: 32, 4>}, {pipeline_mode = #tpu.pipeline_mode<synchronous>, transform_indices = @transform_14, window_bounds = array<i64: 1, 4>}, {transform_indices = @transform_15, window_bounds = array<i64: 1, 32, 64>}, {transform_indices = @transform_16, window_bounds = array<i64: 1, 1, 64>}, {transform_indices = @transform_17, window_bounds = array<i64: 1, 64, 32>}, {transform_indices = @transform_18, window_bounds = array<i64: 1, 1, 32>}, {pipeline_mode = #tpu.pipeline_mode<synchronous>, transform_indices = @transform_19, window_bounds = array<i64: 8, 32>}]} {
    %c0_i32 = arith.constant 0 : i32
    %0 = arith.cmpi eq, %arg0, %c0_i32 : i32
    %1 = arith.extui %0 : i1 to i32
    %c0_i32_0 = arith.constant 0 : i32
    %2 = arith.cmpi ne, %1, %c0_i32_0 : i32
    scf.if %2 {
      %c0_25 = arith.constant 0 : index
      %c0_26 = arith.constant 0 : index
      %36 = vector.load %arg1[%c0_25, %c0_26] : memref<8x32xf32, #tpu.memory_space<vmem>>, vector<8x32xf32>
      %c0_27 = arith.constant 0 : index
      %c0_28 = arith.constant 0 : index
      %37 = vector.load %arg2[%c0_27, %c0_28] : memref<1x32xf32, #tpu.memory_space<vmem>>, vector<1x32xf32>
      %c0_29 = arith.constant 0 : index
      %c0_30 = arith.constant 0 : index
      %38 = vector.load %arg3[%c0_29, %c0_30] : memref<1x32xf32, #tpu.memory_space<vmem>>, vector<1x32xf32>
      %cst_31 = arith.constant dense<0.000000e+00> : vector<8xf32>
      %39 = vector.multi_reduction <add>, %36, %cst_31 [1] : vector<8x32xf32> to vector<8xf32>
      %40 = vector.shape_cast %39 : vector<8xf32> to vector<8x1xf32>
      %cst_32 = arith.constant 3.200000e+01 : f32
      %41 = vector.broadcast %cst_32 : f32 to vector<8x1xf32>
      %42 = arith.divf %40, %41 : vector<8x1xf32>
      %43 = vector.broadcast %42 : vector<8x1xf32> to vector<8x32xf32>
      %44 = arith.subf %36, %43 : vector<8x32xf32>
      %45 = arith.mulf %44, %44 : vector<8x32xf32>
      %cst_33 = arith.constant dense<0.000000e+00> : vector<8xf32>
      %46 = vector.multi_reduction <add>, %45, %cst_33 [1] : vector<8x32xf32> to vector<8xf32>
      %47 = vector.shape_cast %46 : vector<8xf32> to vector<8x1xf32>
      %cst_34 = arith.constant 3.200000e+01 : f32
      %48 = vector.broadcast %cst_34 : f32 to vector<8x1xf32>
      %49 = arith.divf %47, %48 : vector<8x1xf32>
      %50 = vector.broadcast %42 : vector<8x1xf32> to vector<8x32xf32>
      %51 = arith.subf %36, %50 : vector<8x32xf32>
      %cst_35 = arith.constant 9.99999974E-6 : f32
      %52 = vector.broadcast %cst_35 : f32 to vector<8x1xf32>
      %53 = arith.addf %49, %52 : vector<8x1xf32>
      %54 = math.rsqrt %53 : vector<8x1xf32>
      %55 = vector.broadcast %54 : vector<8x1xf32> to vector<8x32xf32>
      %56 = arith.mulf %51, %55 : vector<8x32xf32>
      %57 = vector.broadcast %37 : vector<1x32xf32> to vector<8x32xf32>
      %58 = arith.mulf %56, %57 : vector<8x32xf32>
      %59 = vector.broadcast %38 : vector<1x32xf32> to vector<8x32xf32>
      %60 = arith.addf %58, %59 : vector<8x32xf32>
      %c0_36 = arith.constant 0 : index
      %c0_37 = arith.constant 0 : index
      %61 = vector.load %arg6[%c0_36, %c0_37] : memref<32x32xf32, #tpu.memory_space<vmem>>, vector<32x32xf32>
      %cst_38 = arith.constant dense<0.000000e+00> : vector<8x32xf32>
      %62 = tpu.matmul %60, %61, %cst_38 {dimension_numbers = #tpu.dot_dimension_numbers<[1], [0], [0], [1], [0, 0, 1, 1], [], []>} : vector<8x32xf32>, vector<32x32xf32>, vector<8x32xf32> -> vector<8x32xf32>
      %c0_39 = arith.constant 0 : index
      %c0_40 = arith.constant 0 : index
      %63 = vector.load %arg7[%c0_39, %c0_40] : memref<1x32xf32, #tpu.memory_space<vmem>>, vector<1x32xf32>
      %64 = vector.broadcast %63 : vector<1x32xf32> to vector<8x32xf32>
      %65 = arith.addf %62, %64 : vector<8x32xf32>
      %c0_41 = arith.constant 0 : index
      %c0_42 = arith.constant 0 : index
      %66 = vector.load %arg8[%c0_41, %c0_42] : memref<32x32xf32, #tpu.memory_space<vmem>>, vector<32x32xf32>
      %cst_43 = arith.constant dense<0.000000e+00> : vector<8x32xf32>
      %67 = tpu.matmul %60, %66, %cst_43 {dimension_numbers = #tpu.dot_dimension_numbers<[1], [0], [0], [1], [0, 0, 1, 1], [], []>} : vector<8x32xf32>, vector<32x32xf32>, vector<8x32xf32> -> vector<8x32xf32>
      %c0_44 = arith.constant 0 : index
      %c0_45 = arith.constant 0 : index
      %68 = vector.load %arg9[%c0_44, %c0_45] : memref<1x32xf32, #tpu.memory_space<vmem>>, vector<1x32xf32>
      %69 = vector.broadcast %68 : vector<1x32xf32> to vector<8x32xf32>
      %70 = arith.addf %67, %69 : vector<8x32xf32>
      %c0_46 = arith.constant 0 : index
      %c0_47 = arith.constant 0 : index
      %71 = vector.load %arg10[%c0_46, %c0_47] : memref<32x32xf32, #tpu.memory_space<vmem>>, vector<32x32xf32>
      %cst_48 = arith.constant dense<0.000000e+00> : vector<8x32xf32>
      %72 = tpu.matmul %60, %71, %cst_48 {dimension_numbers = #tpu.dot_dimension_numbers<[1], [0], [0], [1], [0, 0, 1, 1], [], []>} : vector<8x32xf32>, vector<32x32xf32>, vector<8x32xf32> -> vector<8x32xf32>
      %c0_49 = arith.constant 0 : index
      %c0_50 = arith.constant 0 : index
      %73 = vector.load %arg11[%c0_49, %c0_50] : memref<1x32xf32, #tpu.memory_space<vmem>>, vector<1x32xf32>
      %74 = vector.broadcast %73 : vector<1x32xf32> to vector<8x32xf32>
      %75 = arith.addf %72, %74 : vector<8x32xf32>
      %76 = tpu.iota {dimensions = array<i32: 0>} : vector<8x8xi32>
      %77 = tpu.iota {dimensions = array<i32: 1>} : vector<8x8xi32>
      %78 = arith.cmpi sgt, %77, %76 : vector<8x8xi32>
      %cst_51 = arith.constant -1.000000e+09 : f32
      %cst_52 = arith.constant 0.000000e+00 : f32
      %79 = vector.broadcast %cst_51 : f32 to vector<8x8xf32>
      %80 = vector.broadcast %cst_52 : f32 to vector<8x8xf32>
      %81 = arith.select %78, %79, %80 : vector<8x8xi1>, vector<8x8xf32>
      %82 = vector.extract_strided_slice %65 {offsets = [0, 0], sizes = [8, 8], strides = [1, 1]} : vector<8x32xf32> to vector<8x8xf32>
      %83 = vector.extract_strided_slice %70 {offsets = [0, 0], sizes = [8, 8], strides = [1, 1]} : vector<8x32xf32> to vector<8x8xf32>
      %cst_53 = arith.constant dense<0.000000e+00> : vector<8x8xf32>
      %84 = tpu.matmul %82, %83, %cst_53 {dimension_numbers = #tpu.dot_dimension_numbers<[1], [1], [0], [0], [0, 0, 1, 0], [], []>} : vector<8x8xf32>, vector<8x8xf32>, vector<8x8xf32> -> vector<8x8xf32>
      %cst_54 = arith.constant 0.353553385 : f32
      %85 = vector.broadcast %cst_54 : f32 to vector<8x8xf32>
      %86 = arith.mulf %84, %85 : vector<8x8xf32>
      %87 = arith.addf %86, %81 : vector<8x8xf32>
      %cst_55 = arith.constant dense<0xFF800000> : vector<8xf32>
      %88 = vector.multi_reduction <maximumf>, %87, %cst_55 [1] : vector<8x8xf32> to vector<8xf32>
      %89 = vector.shape_cast %88 : vector<8xf32> to vector<8x1xf32>
      %90 = vector.broadcast %89 : vector<8x1xf32> to vector<8x8xf32>
      %91 = arith.subf %87, %90 : vector<8x8xf32>
      %92 = math.exp %91 : vector<8x8xf32>
      %cst_56 = arith.constant dense<0.000000e+00> : vector<8xf32>
      %93 = vector.multi_reduction <add>, %92, %cst_56 [1] : vector<8x8xf32> to vector<8xf32>
      %94 = vector.shape_cast %93 : vector<8xf32> to vector<8x1xf32>
      %95 = vector.broadcast %94 : vector<8x1xf32> to vector<8x8xf32>
      %96 = arith.divf %92, %95 : vector<8x8xf32>
      %97 = vector.extract_strided_slice %75 {offsets = [0, 0], sizes = [8, 8], strides = [1, 1]} : vector<8x32xf32> to vector<8x8xf32>
      %cst_57 = arith.constant dense<0.000000e+00> : vector<8x8xf32>
      %98 = tpu.matmul %96, %97, %cst_57 {dimension_numbers = #tpu.dot_dimension_numbers<[1], [0], [0], [1], [0, 0, 1, 1], [], []>} : vector<8x8xf32>, vector<8x8xf32>, vector<8x8xf32> -> vector<8x8xf32>
      %99 = vector.extract_strided_slice %65 {offsets = [0, 8], sizes = [8, 8], strides = [1, 1]} : vector<8x32xf32> to vector<8x8xf32>
      %100 = vector.extract_strided_slice %70 {offsets = [0, 8], sizes = [8, 8], strides = [1, 1]} : vector<8x32xf32> to vector<8x8xf32>
      %cst_58 = arith.constant dense<0.000000e+00> : vector<8x8xf32>
      %101 = tpu.matmul %99, %100, %cst_58 {dimension_numbers = #tpu.dot_dimension_numbers<[1], [1], [0], [0], [0, 0, 1, 0], [], []>} : vector<8x8xf32>, vector<8x8xf32>, vector<8x8xf32> -> vector<8x8xf32>
      %cst_59 = arith.constant 0.353553385 : f32
      %102 = vector.broadcast %cst_59 : f32 to vector<8x8xf32>
      %103 = arith.mulf %101, %102 : vector<8x8xf32>
      %104 = arith.addf %103, %81 : vector<8x8xf32>
      %cst_60 = arith.constant dense<0xFF800000> : vector<8xf32>
      %105 = vector.multi_reduction <maximumf>, %104, %cst_60 [1] : vector<8x8xf32> to vector<8xf32>
      %106 = vector.shape_cast %105 : vector<8xf32> to vector<8x1xf32>
      %107 = vector.broadcast %106 : vector<8x1xf32> to vector<8x8xf32>
      %108 = arith.subf %104, %107 : vector<8x8xf32>
      %109 = math.exp %108 : vector<8x8xf32>
      %cst_61 = arith.constant dense<0.000000e+00> : vector<8xf32>
      %110 = vector.multi_reduction <add>, %109, %cst_61 [1] : vector<8x8xf32> to vector<8xf32>
      %111 = vector.shape_cast %110 : vector<8xf32> to vector<8x1xf32>
      %112 = vector.broadcast %111 : vector<8x1xf32> to vector<8x8xf32>
      %113 = arith.divf %109, %112 : vector<8x8xf32>
      %114 = vector.extract_strided_slice %75 {offsets = [0, 8], sizes = [8, 8], strides = [1, 1]} : vector<8x32xf32> to vector<8x8xf32>
      %cst_62 = arith.constant dense<0.000000e+00> : vector<8x8xf32>
      %115 = tpu.matmul %113, %114, %cst_62 {dimension_numbers = #tpu.dot_dimension_numbers<[1], [0], [0], [1], [0, 0, 1, 1], [], []>} : vector<8x8xf32>, vector<8x8xf32>, vector<8x8xf32> -> vector<8x8xf32>
      %116 = vector.extract_strided_slice %65 {offsets = [0, 16], sizes = [8, 8], strides = [1, 1]} : vector<8x32xf32> to vector<8x8xf32>
      %117 = vector.extract_strided_slice %70 {offsets = [0, 16], sizes = [8, 8], strides = [1, 1]} : vector<8x32xf32> to vector<8x8xf32>
      %cst_63 = arith.constant dense<0.000000e+00> : vector<8x8xf32>
      %118 = tpu.matmul %116, %117, %cst_63 {dimension_numbers = #tpu.dot_dimension_numbers<[1], [1], [0], [0], [0, 0, 1, 0], [], []>} : vector<8x8xf32>, vector<8x8xf32>, vector<8x8xf32> -> vector<8x8xf32>
      %cst_64 = arith.constant 0.353553385 : f32
      %119 = vector.broadcast %cst_64 : f32 to vector<8x8xf32>
      %120 = arith.mulf %118, %119 : vector<8x8xf32>
      %121 = arith.addf %120, %81 : vector<8x8xf32>
      %cst_65 = arith.constant dense<0xFF800000> : vector<8xf32>
      %122 = vector.multi_reduction <maximumf>, %121, %cst_65 [1] : vector<8x8xf32> to vector<8xf32>
      %123 = vector.shape_cast %122 : vector<8xf32> to vector<8x1xf32>
      %124 = vector.broadcast %123 : vector<8x1xf32> to vector<8x8xf32>
      %125 = arith.subf %121, %124 : vector<8x8xf32>
      %126 = math.exp %125 : vector<8x8xf32>
      %cst_66 = arith.constant dense<0.000000e+00> : vector<8xf32>
      %127 = vector.multi_reduction <add>, %126, %cst_66 [1] : vector<8x8xf32> to vector<8xf32>
      %128 = vector.shape_cast %127 : vector<8xf32> to vector<8x1xf32>
      %129 = vector.broadcast %128 : vector<8x1xf32> to vector<8x8xf32>
      %130 = arith.divf %126, %129 : vector<8x8xf32>
      %131 = vector.extract_strided_slice %75 {offsets = [0, 16], sizes = [8, 8], strides = [1, 1]} : vector<8x32xf32> to vector<8x8xf32>
      %cst_67 = arith.constant dense<0.000000e+00> : vector<8x8xf32>
      %132 = tpu.matmul %130, %131, %cst_67 {dimension_numbers = #tpu.dot_dimension_numbers<[1], [0], [0], [1], [0, 0, 1, 1], [], []>} : vector<8x8xf32>, vector<8x8xf32>, vector<8x8xf32> -> vector<8x8xf32>
      %133 = vector.extract_strided_slice %65 {offsets = [0, 24], sizes = [8, 8], strides = [1, 1]} : vector<8x32xf32> to vector<8x8xf32>
      %134 = vector.extract_strided_slice %70 {offsets = [0, 24], sizes = [8, 8], strides = [1, 1]} : vector<8x32xf32> to vector<8x8xf32>
      %cst_68 = arith.constant dense<0.000000e+00> : vector<8x8xf32>
      %135 = tpu.matmul %133, %134, %cst_68 {dimension_numbers = #tpu.dot_dimension_numbers<[1], [1], [0], [0], [0, 0, 1, 0], [], []>} : vector<8x8xf32>, vector<8x8xf32>, vector<8x8xf32> -> vector<8x8xf32>
      %cst_69 = arith.constant 0.353553385 : f32
      %136 = vector.broadcast %cst_69 : f32 to vector<8x8xf32>
      %137 = arith.mulf %135, %136 : vector<8x8xf32>
      %138 = arith.addf %137, %81 : vector<8x8xf32>
      %cst_70 = arith.constant dense<0xFF800000> : vector<8xf32>
      %139 = vector.multi_reduction <maximumf>, %138, %cst_70 [1] : vector<8x8xf32> to vector<8xf32>
      %140 = vector.shape_cast %139 : vector<8xf32> to vector<8x1xf32>
      %141 = vector.broadcast %140 : vector<8x1xf32> to vector<8x8xf32>
      %142 = arith.subf %138, %141 : vector<8x8xf32>
      %143 = math.exp %142 : vector<8x8xf32>
      %cst_71 = arith.constant dense<0.000000e+00> : vector<8xf32>
      %144 = vector.multi_reduction <add>, %143, %cst_71 [1] : vector<8x8xf32> to vector<8xf32>
      %145 = vector.shape_cast %144 : vector<8xf32> to vector<8x1xf32>
      %146 = vector.broadcast %145 : vector<8x1xf32> to vector<8x8xf32>
      %147 = arith.divf %143, %146 : vector<8x8xf32>
      %148 = vector.extract_strided_slice %75 {offsets = [0, 24], sizes = [8, 8], strides = [1, 1]} : vector<8x32xf32> to vector<8x8xf32>
      %cst_72 = arith.constant dense<0.000000e+00> : vector<8x8xf32>
      %149 = tpu.matmul %147, %148, %cst_72 {dimension_numbers = #tpu.dot_dimension_numbers<[1], [0], [0], [1], [0, 0, 1, 1], [], []>} : vector<8x8xf32>, vector<8x8xf32>, vector<8x8xf32> -> vector<8x8xf32>
      %150 = tpu.concatenate %98, %115, %132, %149 in 1 : vector<8x8xf32>, vector<8x8xf32>, vector<8x8xf32>, vector<8x8xf32> -> vector<8x32xf32>
      %c0_73 = arith.constant 0 : index
      %c0_74 = arith.constant 0 : index
      %151 = vector.load %arg12[%c0_73, %c0_74] : memref<32x32xf32, #tpu.memory_space<vmem>>, vector<32x32xf32>
      %cst_75 = arith.constant dense<0.000000e+00> : vector<8x32xf32>
      %152 = tpu.matmul %150, %151, %cst_75 {dimension_numbers = #tpu.dot_dimension_numbers<[1], [0], [0], [1], [0, 0, 1, 1], [], []>} : vector<8x32xf32>, vector<32x32xf32>, vector<8x32xf32> -> vector<8x32xf32>
      %c0_76 = arith.constant 0 : index
      %c0_77 = arith.constant 0 : index
      %153 = vector.load %arg13[%c0_76, %c0_77] : memref<1x32xf32, #tpu.memory_space<vmem>>, vector<1x32xf32>
      %154 = vector.broadcast %153 : vector<1x32xf32> to vector<8x32xf32>
      %155 = arith.addf %152, %154 : vector<8x32xf32>
      %156 = arith.addf %36, %155 : vector<8x32xf32>
      %c0_78 = arith.constant 0 : index
      %c0_79 = arith.constant 0 : index
      %157 = vector.load %arg4[%c0_78, %c0_79] : memref<1x32xf32, #tpu.memory_space<vmem>>, vector<1x32xf32>
      %c0_80 = arith.constant 0 : index
      %c0_81 = arith.constant 0 : index
      %158 = vector.load %arg5[%c0_80, %c0_81] : memref<1x32xf32, #tpu.memory_space<vmem>>, vector<1x32xf32>
      %cst_82 = arith.constant dense<0.000000e+00> : vector<8xf32>
      %159 = vector.multi_reduction <add>, %156, %cst_82 [1] : vector<8x32xf32> to vector<8xf32>
      %160 = vector.shape_cast %159 : vector<8xf32> to vector<8x1xf32>
      %cst_83 = arith.constant 3.200000e+01 : f32
      %161 = vector.broadcast %cst_83 : f32 to vector<8x1xf32>
      %162 = arith.divf %160, %161 : vector<8x1xf32>
      %163 = vector.broadcast %162 : vector<8x1xf32> to vector<8x32xf32>
      %164 = arith.subf %156, %163 : vector<8x32xf32>
      %165 = arith.mulf %164, %164 : vector<8x32xf32>
      %cst_84 = arith.constant dense<0.000000e+00> : vector<8xf32>
      %166 = vector.multi_reduction <add>, %165, %cst_84 [1] : vector<8x32xf32> to vector<8xf32>
      %167 = vector.shape_cast %166 : vector<8xf32> to vector<8x1xf32>
      %cst_85 = arith.constant 3.200000e+01 : f32
      %168 = vector.broadcast %cst_85 : f32 to vector<8x1xf32>
      %169 = arith.divf %167, %168 : vector<8x1xf32>
      %170 = vector.broadcast %162 : vector<8x1xf32> to vector<8x32xf32>
      %171 = arith.subf %156, %170 : vector<8x32xf32>
      %cst_86 = arith.constant 9.99999974E-6 : f32
      %172 = vector.broadcast %cst_86 : f32 to vector<8x1xf32>
      %173 = arith.addf %169, %172 : vector<8x1xf32>
      %174 = math.rsqrt %173 : vector<8x1xf32>
      %175 = vector.broadcast %174 : vector<8x1xf32> to vector<8x32xf32>
      %176 = arith.mulf %171, %175 : vector<8x32xf32>
      %177 = vector.broadcast %157 : vector<1x32xf32> to vector<8x32xf32>
      %178 = arith.mulf %176, %177 : vector<8x32xf32>
      %179 = vector.broadcast %158 : vector<1x32xf32> to vector<8x32xf32>
      %180 = arith.addf %178, %179 : vector<8x32xf32>
      %c0_87 = arith.constant 0 : index
      %c0_88 = arith.constant 0 : index
      %181 = vector.load %arg21[%c0_87, %c0_88] : memref<8x32xf32, #tpu.memory_space<vmem>>, vector<8x32xf32>
      tpu.vector_store %arg21[%c0_87, %c0_88], %180 {strides = array<i32>} : memref<8x32xf32, #tpu.memory_space<vmem>>, vector<8x32xf32>,
      %c0_89 = arith.constant 0 : index
      %c0_90 = arith.constant 0 : index
      %182 = vector.load %arg23[%c0_89, %c0_90] : memref<8x32xf32, #tpu.memory_space<vmem>>, vector<8x32xf32>
      tpu.vector_store %arg23[%c0_89, %c0_90], %156 {strides = array<i32>} : memref<8x32xf32, #tpu.memory_space<vmem>>, vector<8x32xf32>,
      %c0_91 = arith.constant 0 : index
      %c0_92 = arith.constant 0 : index
      %183 = vector.load %arg14[%c0_91, %c0_92] : memref<32x4xf32, #tpu.memory_space<vmem>>, vector<32x4xf32>
      %cst_93 = arith.constant dense<0.000000e+00> : vector<8x4xf32>
      %184 = tpu.matmul %180, %183, %cst_93 {dimension_numbers = #tpu.dot_dimension_numbers<[1], [0], [0], [1], [0, 0, 1, 1], [], []>} : vector<8x32xf32>, vector<32x4xf32>, vector<8x4xf32> -> vector<8x4xf32>
      %c0_94 = arith.constant 0 : index
      %c0_95 = arith.constant 0 : index
      %185 = vector.load %arg15[%c0_94, %c0_95] : memref<1x4xf32, #tpu.memory_space<vmem>>, vector<1x4xf32>
      %186 = vector.broadcast %185 : vector<1x4xf32> to vector<8x4xf32>
      %187 = arith.addf %184, %186 : vector<8x4xf32>
      %cst_96 = arith.constant dense<0xFF800000> : vector<8xf32>
      %188 = vector.multi_reduction <maximumf>, %187, %cst_96 [1] : vector<8x4xf32> to vector<8xf32>
      %189 = vector.shape_cast %188 : vector<8xf32> to vector<8x1xf32>
      %190 = vector.broadcast %189 : vector<8x1xf32> to vector<8x4xf32>
      %191 = arith.subf %187, %190 : vector<8x4xf32>
      %192 = math.exp %191 : vector<8x4xf32>
      %cst_97 = arith.constant dense<0.000000e+00> : vector<8xf32>
      %193 = vector.multi_reduction <add>, %192, %cst_97 [1] : vector<8x4xf32> to vector<8xf32>
      %194 = vector.shape_cast %193 : vector<8xf32> to vector<8x1xf32>
      %195 = vector.broadcast %194 : vector<8x1xf32> to vector<8x4xf32>
      %196 = arith.divf %192, %195 : vector<8x4xf32>
      %197 = tpu.iota {dimensions = array<i32: 1>} : vector<8x4xi32>
      %cst_98 = arith.constant dense<0xFF800000> : vector<8xf32>
      %198 = vector.multi_reduction <maximumf>, %196, %cst_98 [1] : vector<8x4xf32> to vector<8xf32>
      %199 = vector.shape_cast %198 : vector<8xf32> to vector<8x1xf32>
      %200 = vector.broadcast %199 : vector<8x1xf32> to vector<8x4xf32>
      %201 = arith.cmpf oeq, %196, %200 : vector<8x4xf32>
      %c4_i32 = arith.constant 4 : i32
      %202 = vector.broadcast %c4_i32 : i32 to vector<8x4xi32>
      %203 = arith.select %201, %197, %202 : vector<8x4xi1>, vector<8x4xi32>
      %cst_99 = arith.constant dense<2147483647> : vector<8xi32>
      %204 = vector.multi_reduction <minsi>, %203, %cst_99 [1] : vector<8x4xi32> to vector<8xi32>
      %205 = vector.shape_cast %204 : vector<8xi32> to vector<8x1xi32>
      %206 = vector.broadcast %205 : vector<8x1xi32> to vector<8x4xi32>
      %207 = arith.cmpi eq, %197, %206 : vector<8x4xi32>
      %cst_100 = arith.constant 0.000000e+00 : f32
      %208 = vector.broadcast %cst_100 : f32 to vector<8x4xf32>
      %209 = arith.select %207, %196, %208 : vector<8x4xi1>, vector<8x4xf32>
      %c0_101 = arith.constant 0 : index
      %c0_102 = arith.constant 0 : index
      %210 = vector.load %arg22[%c0_101, %c0_102] : memref<8x4xf32, #tpu.memory_space<vmem>>, vector<8x4xf32>
      tpu.vector_store %arg22[%c0_101, %c0_102], %209 {strides = array<i32>} : memref<8x4xf32, #tpu.memory_space<vmem>>, vector<8x4xf32>,
    } else {
    }
    %c0 = arith.constant 0 : index
    %c0_1 = arith.constant 0 : index
    %3 = vector.load %arg22[%c0, %c0_1] : memref<8x4xf32, #tpu.memory_space<vmem>>, vector<8x4xf32>
    %4 = tpu.iota {dimensions = array<i32: 1>} : vector<8x4xi32>
    %5 = vector.broadcast %arg0 : i32 to vector<8x4xi32>
    %6 = arith.cmpi eq, %4, %5 : vector<8x4xi32>
    %cst = arith.constant 0.000000e+00 : f32
    %7 = vector.broadcast %cst : f32 to vector<8x4xf32>
    %8 = arith.select %6, %3, %7 : vector<8x4xi1>, vector<8x4xf32>
    %cst_2 = arith.constant dense<0.000000e+00> : vector<8xf32>
    %9 = vector.multi_reduction <add>, %8, %cst_2 [1] : vector<8x4xf32> to vector<8xf32>
    %10 = vector.shape_cast %9 : vector<8xf32> to vector<8x1xf32>
    %c0_3 = arith.constant 0 : index
    %c0_4 = arith.constant 0 : index
    %11 = vector.load %arg21[%c0_3, %c0_4] : memref<8x32xf32, #tpu.memory_space<vmem>>, vector<8x32xf32>
    %c0_5 = arith.constant 0 : index
    %c0_6 = arith.constant 0 : index
    %c0_7 = arith.constant 0 : index
    %12 = vector.load %arg16[%c0_5, %c0_6, %c0_7] : memref<1x32x64xf32, #tpu.memory_space<vmem>>, vector<1x32x64xf32>
    %13 = vector.shape_cast %12 : vector<1x32x64xf32> to vector<32x64xf32>
    %cst_8 = arith.constant dense<0.000000e+00> : vector<8x64xf32>
    %14 = tpu.matmul %11, %13, %cst_8 {dimension_numbers = #tpu.dot_dimension_numbers<[1], [0], [0], [1], [0, 0, 1, 1], [], []>} : vector<8x32xf32>, vector<32x64xf32>, vector<8x64xf32> -> vector<8x64xf32>
    %c0_9 = arith.constant 0 : index
    %c0_10 = arith.constant 0 : index
    %c0_11 = arith.constant 0 : index
    %15 = vector.load %arg17[%c0_9, %c0_10, %c0_11] : memref<1x1x64xf32, #tpu.memory_space<vmem>>, vector<1x1x64xf32>
    %16 = vector.shape_cast %15 : vector<1x1x64xf32> to vector<1x64xf32>
    %17 = vector.broadcast %16 : vector<1x64xf32> to vector<8x64xf32>
    %18 = arith.addf %14, %17 : vector<8x64xf32>
    %cst_12 = arith.constant 0.000000e+00 : f32
    %19 = vector.broadcast %cst_12 : f32 to vector<8x64xf32>
    %20 = arith.maximumf %18, %19 : vector<8x64xf32>
    %c0_13 = arith.constant 0 : index
    %c0_14 = arith.constant 0 : index
    %c0_15 = arith.constant 0 : index
    %21 = vector.load %arg18[%c0_13, %c0_14, %c0_15] : memref<1x64x32xf32, #tpu.memory_space<vmem>>, vector<1x64x32xf32>
    %22 = vector.shape_cast %21 : vector<1x64x32xf32> to vector<64x32xf32>
    %cst_16 = arith.constant dense<0.000000e+00> : vector<8x32xf32>
    %23 = tpu.matmul %20, %22, %cst_16 {dimension_numbers = #tpu.dot_dimension_numbers<[1], [0], [0], [1], [0, 0, 1, 1], [], []>} : vector<8x64xf32>, vector<64x32xf32>, vector<8x32xf32> -> vector<8x32xf32>
    %c0_17 = arith.constant 0 : index
    %c0_18 = arith.constant 0 : index
    %c0_19 = arith.constant 0 : index
    %24 = vector.load %arg19[%c0_17, %c0_18, %c0_19] : memref<1x1x32xf32, #tpu.memory_space<vmem>>, vector<1x1x32xf32>
    %25 = vector.shape_cast %24 : vector<1x1x32xf32> to vector<1x32xf32>
    %26 = vector.broadcast %25 : vector<1x32xf32> to vector<8x32xf32>
    %27 = arith.addf %23, %26 : vector<8x32xf32>
    %c0_20 = arith.constant 0 : index
    %c0_21 = arith.constant 0 : index
    %28 = vector.load %arg23[%c0_20, %c0_21] : memref<8x32xf32, #tpu.memory_space<vmem>>, vector<8x32xf32>
    %29 = vector.broadcast %10 : vector<8x1xf32> to vector<8x32xf32>
    %30 = arith.mulf %29, %27 : vector<8x32xf32>
    %31 = arith.addf %28, %30 : vector<8x32xf32>
    %c0_22 = arith.constant 0 : index
    %c0_23 = arith.constant 0 : index
    %32 = vector.load %arg23[%c0_22, %c0_23] : memref<8x32xf32, #tpu.memory_space<vmem>>, vector<8x32xf32>
    tpu.vector_store %arg23[%c0_22, %c0_23], %31 {strides = array<i32>} : memref<8x32xf32, #tpu.memory_space<vmem>>, vector<8x32xf32>,
    %c3_i32 = arith.constant 3 : i32
    %33 = arith.cmpi eq, %arg0, %c3_i32 : i32
    %34 = arith.extui %33 : i1 to i32
    %c0_i32_24 = arith.constant 0 : i32
    %35 = arith.cmpi ne, %34, %c0_i32_24 : i32
    scf.if %35 {
      %c0_25 = arith.constant 0 : index
      %c0_26 = arith.constant 0 : index
      %36 = vector.load %arg23[%c0_25, %c0_26] : memref<8x32xf32, #tpu.memory_space<vmem>>, vector<8x32xf32>
      %c0_27 = arith.constant 0 : index
      %c0_28 = arith.constant 0 : index
      %37 = vector.load %arg20[%c0_27, %c0_28] : memref<8x32xf32, #tpu.memory_space<vmem>>, vector<8x32xf32>
      tpu.vector_store %arg20[%c0_27, %c0_28], %36 {strides = array<i32>} : memref<8x32xf32, #tpu.memory_space<vmem>>, vector<8x32xf32>,
    } else {
    }
    return
  }
  func.func @transform_0(%arg0: i32) -> (i32, i32) {
    %c0_i32 = arith.constant 0 : i32
    %c0_i32_0 = arith.constant 0 : i32
    %c0_i32_1 = arith.constant 0 : i32
    return %c0_i32, %c0_i32_0 : i32, i32
  }
  func.func @transform_1(%arg0: i32) -> (i32, i32) {
    %c0_i32 = arith.constant 0 : i32
    %c0_i32_0 = arith.constant 0 : i32
    %c0_i32_1 = arith.constant 0 : i32
    return %c0_i32, %c0_i32_0 : i32, i32
  }
  func.func @transform_2(%arg0: i32) -> (i32, i32) {
    %c0_i32 = arith.constant 0 : i32
    %c0_i32_0 = arith.constant 0 : i32
    %c0_i32_1 = arith.constant 0 : i32
    return %c0_i32, %c0_i32_0 : i32, i32
  }
  func.func @transform_3(%arg0: i32) -> (i32, i32) {
    %c0_i32 = arith.constant 0 : i32
    %c0_i32_0 = arith.constant 0 : i32
    %c0_i32_1 = arith.constant 0 : i32
    return %c0_i32, %c0_i32_0 : i32, i32
  }
  func.func @transform_4(%arg0: i32) -> (i32, i32) {
    %c0_i32 = arith.constant 0 : i32
    %c0_i32_0 = arith.constant 0 : i32
    %c0_i32_1 = arith.constant 0 : i32
    return %c0_i32, %c0_i32_0 : i32, i32
  }
  func.func @transform_5(%arg0: i32) -> (i32, i32) {
    %c0_i32 = arith.constant 0 : i32
    %c0_i32_0 = arith.constant 0 : i32
    %c0_i32_1 = arith.constant 0 : i32
    return %c0_i32, %c0_i32_0 : i32, i32
  }
  func.func @transform_6(%arg0: i32) -> (i32, i32) {
    %c0_i32 = arith.constant 0 : i32
    %c0_i32_0 = arith.constant 0 : i32
    %c0_i32_1 = arith.constant 0 : i32
    return %c0_i32, %c0_i32_0 : i32, i32
  }
  func.func @transform_7(%arg0: i32) -> (i32, i32) {
    %c0_i32 = arith.constant 0 : i32
    %c0_i32_0 = arith.constant 0 : i32
    %c0_i32_1 = arith.constant 0 : i32
    return %c0_i32, %c0_i32_0 : i32, i32
  }
  func.func @transform_8(%arg0: i32) -> (i32, i32) {
    %c0_i32 = arith.constant 0 : i32
    %c0_i32_0 = arith.constant 0 : i32
    %c0_i32_1 = arith.constant 0 : i32
    return %c0_i32, %c0_i32_0 : i32, i32
  }
  func.func @transform_9(%arg0: i32) -> (i32, i32) {
    %c0_i32 = arith.constant 0 : i32
    %c0_i32_0 = arith.constant 0 : i32
    %c0_i32_1 = arith.constant 0 : i32
    return %c0_i32, %c0_i32_0 : i32, i32
  }
  func.func @transform_10(%arg0: i32) -> (i32, i32) {
    %c0_i32 = arith.constant 0 : i32
    %c0_i32_0 = arith.constant 0 : i32
    %c0_i32_1 = arith.constant 0 : i32
    return %c0_i32, %c0_i32_0 : i32, i32
  }
  func.func @transform_11(%arg0: i32) -> (i32, i32) {
    %c0_i32 = arith.constant 0 : i32
    %c0_i32_0 = arith.constant 0 : i32
    %c0_i32_1 = arith.constant 0 : i32
    return %c0_i32, %c0_i32_0 : i32, i32
  }
  func.func @transform_12(%arg0: i32) -> (i32, i32) {
    %c0_i32 = arith.constant 0 : i32
    %c0_i32_0 = arith.constant 0 : i32
    %c0_i32_1 = arith.constant 0 : i32
    return %c0_i32, %c0_i32_0 : i32, i32
  }
  func.func @transform_13(%arg0: i32) -> (i32, i32) {
    %c0_i32 = arith.constant 0 : i32
    %c0_i32_0 = arith.constant 0 : i32
    %c0_i32_1 = arith.constant 0 : i32
    return %c0_i32, %c0_i32_0 : i32, i32
  }
  func.func @transform_14(%arg0: i32) -> (i32, i32) {
    %c0_i32 = arith.constant 0 : i32
    %c0_i32_0 = arith.constant 0 : i32
    %c0_i32_1 = arith.constant 0 : i32
    return %c0_i32, %c0_i32_0 : i32, i32
  }
  func.func @transform_15(%arg0: i32) -> (i32, i32, i32) {
    %c0_i32 = arith.constant 0 : i32
    %c0_i32_0 = arith.constant 0 : i32
    %c0_i32_1 = arith.constant 0 : i32
    return %arg0, %c0_i32, %c0_i32_0 : i32, i32, i32
  }
  func.func @transform_16(%arg0: i32) -> (i32, i32, i32) {
    %c0_i32 = arith.constant 0 : i32
    %c0_i32_0 = arith.constant 0 : i32
    %c0_i32_1 = arith.constant 0 : i32
    return %arg0, %c0_i32, %c0_i32_0 : i32, i32, i32
  }
  func.func @transform_17(%arg0: i32) -> (i32, i32, i32) {
    %c0_i32 = arith.constant 0 : i32
    %c0_i32_0 = arith.constant 0 : i32
    %c0_i32_1 = arith.constant 0 : i32
    return %arg0, %c0_i32, %c0_i32_0 : i32, i32, i32
  }
  func.func @transform_18(%arg0: i32) -> (i32, i32, i32) {
    %c0_i32 = arith.constant 0 : i32
    %c0_i32_0 = arith.constant 0 : i32
    %c0_i32_1 = arith.constant 0 : i32
    return %arg0, %c0_i32, %c0_i32_0 : i32, i32, i32
  }
  func.func @transform_19(%arg0: i32) -> (i32, i32) {
    %c0_i32 = arith.constant 0 : i32
    %c0_i32_0 = arith.constant 0 : i32
    %c0_i32_1 = arith.constant 0 : i32
    return %c0_i32, %c0_i32_0 : i32, i32
  }
}

</mosaic_0001>

<llo_original>
// kernel: tpu_custom_call.1
$region0: #{tpu_custom_call.1}
  #allocation0 [shape = 'u32[]', space=smem, size = 0x4, offset = 0x4, fixed_abs, tag = 'smem constant byte address 0x4 - core index']
  #allocation1 [shape = 'u32[72,128]{1,0:T(1,128)}', space=vmem, size = 0x9000, scoped, tag = 'internal scratch']
  #allocation2 [shape = 'f32[8,32]{1,0:T(8,128)}', space=vmem, size = 0x1000, scoped, tag = 'scratch operand']
  #allocation3 [shape = 'f32[8,4]{1,0:T(8,128)}', space=vmem, size = 0x1000, scoped, tag = 'scratch operand']
  #allocation4 [shape = 'f32[8,32]{1,0:T(8,128)}', space=vmem, size = 0x1000, scoped, tag = 'scratch operand']
  %s0 = inlined_call_operand.vmem [shape: f32[8,32], index: 0, kind: input, shape index: {}]
  %s1 = inlined_call_operand.vmem [shape: f32[1,32], index: 1, kind: input, shape index: {}]
  %s2 = inlined_call_operand.vmem [shape: f32[1,32], index: 2, kind: input, shape index: {}]
  %s3 = inlined_call_operand.vmem [shape: f32[1,32], index: 3, kind: input, shape index: {}]
  %s4 = inlined_call_operand.vmem [shape: f32[1,32], index: 4, kind: input, shape index: {}]
  %s5 = inlined_call_operand.vmem [shape: f32[32,32], index: 5, kind: input, shape index: {}]
  %s6 = inlined_call_operand.vmem [shape: f32[1,32], index: 6, kind: input, shape index: {}]
  %s7 = inlined_call_operand.vmem [shape: f32[32,32], index: 7, kind: input, shape index: {}]
  %s8 = inlined_call_operand.vmem [shape: f32[1,32], index: 8, kind: input, shape index: {}]
  %s9 = inlined_call_operand.vmem [shape: f32[32,32], index: 9, kind: input, shape index: {}]
  %s10 = inlined_call_operand.vmem [shape: f32[1,32], index: 10, kind: input, shape index: {}]
  %s11 = inlined_call_operand.vmem [shape: f32[32,32], index: 11, kind: input, shape index: {}]
  %s12 = inlined_call_operand.vmem [shape: f32[1,32], index: 12, kind: input, shape index: {}]
  %s13 = inlined_call_operand.vmem [shape: f32[32,4], index: 13, kind: input, shape index: {}]
  %s14 = inlined_call_operand.vmem [shape: f32[1,4], index: 14, kind: input, shape index: {}]
  %s15 = inlined_call_operand.vmem [shape: f32[4,32,64], index: 15, kind: input, shape index: {}]
  %s16 = inlined_call_operand.vmem [shape: f32[4,1,64], index: 16, kind: input, shape index: {}]
  %s17 = inlined_call_operand.vmem [shape: f32[4,64,32], index: 17, kind: input, shape index: {}]
  %s18 = inlined_call_operand.vmem [shape: f32[4,1,32], index: 18, kind: input, shape index: {}]
  %s19 = inlined_call_operand.hbm [shape: f32[8,32], index: 19, kind: output, shape index: {}]
  %s20 = sld [smem:[#allocation0]]
  $region117: #{tpu_custom_call.1} parent=0
    _
  %s22 = ssub.s32 1, %s20
  %s23 = scalar_select 0, %s22, %s20
  $region1: #{tpu_custom_call.1} parent=0
    #allocation5 [shape = 'u8[4096]{0}', space=vmem, size = 0x1000, scoped, tag = 'output window, operand 0, single buffered']
    #allocation6 [shape = 's32[2]{0}', space=sflag, size = 0x8, scoped, tag = 'scoped memory for tpu_custom_call.1']
    %24 = vsyncpa [#allocation6], 0
    loop: start=0, step=1, limit=6
    $region2: #{tpu_custom_call.1} parent=1 // loop_pre_header
      _
    $region3: #{tpu_custom_call.1} parent=1 // loop_header
      %s26 = sphi 0, %s30
      %p27 = scmp.ge.s32.totalorder %s26, 6
      %s34 = sphi 0, %s34
      %s36 = sphi 0, %s34
      %s37 = sphi 0, %s36
      %s51 = sphi 0, %s37
      %s55 = sphi 0, %s55
      %s57 = sphi 0, %s55
      %s58 = sphi 0, %s57
      %s72 = sphi 0, %s58
      %s76 = sphi 0, %s76
      %s78 = sphi 0, %s76
      %s79 = sphi 0, %s78
      %s93 = sphi 0, %s79
      %s97 = sphi 0, %s97
      %s99 = sphi 0, %s97
      %s100 = sphi 0, %s99
      %s114 = sphi 0, %s100
      %s118 = sphi 0, %s118
      %s120 = sphi 0, %s118
      %s121 = sphi 0, %s120
      %s135 = sphi 0, %s121
      %s139 = sphi 0, %s139
      %s141 = sphi 0, %s139
      %s142 = sphi 0, %s141
      %s156 = sphi 0, %s142
      %s160 = sphi 0, %s160
      %s162 = sphi 0, %s160
      %s163 = sphi 0, %s162
      %s177 = sphi 0, %s163
      %s181 = sphi 0, %s181
      %s183 = sphi 0, %s181
      %s184 = sphi 0, %s183
      %s198 = sphi 0, %s184
      %s202 = sphi 0, %s202
      %s204 = sphi 0, %s202
      %s205 = sphi 0, %s204
      %s219 = sphi 0, %s205
      %s223 = sphi 0, %s223
      %s225 = sphi 0, %s223
      %s226 = sphi 0, %s225
      %s240 = sphi 0, %s226
      %s244 = sphi 0, %s244
      %s246 = sphi 0, %s244
      %s247 = sphi 0, %s246
      %s261 = sphi 0, %s247
      %s265 = sphi 0, %s265
      %s267 = sphi 0, %s265
      %s268 = sphi 0, %s267
      %s282 = sphi 0, %s268
      %s286 = sphi 0, %s286
      %s288 = sphi 0, %s286
      %s289 = sphi 0, %s288
      %s303 = sphi 0, %s289
      %s307 = sphi 0, %s307
      %s309 = sphi 0, %s307
      %s310 = sphi 0, %s309
      %s324 = sphi 0, %s310
      %s328 = sphi 0, %s328
      %s330 = sphi 0, %s328
      %s331 = sphi 0, %s330
      %s345 = sphi 0, %s331
      %s351 = sphi 0, %s353
      %s354 = sphi 0, %s351
      %s355 = sphi 0, %s354
      %s371 = sphi 0, %s355
      %s377 = sphi 0, %s379
      %s380 = sphi 0, %s377
      %s381 = sphi 0, %s380
      %s397 = sphi 0, %s381
      %s403 = sphi 0, %s405
      %s406 = sphi 0, %s403
      %s407 = sphi 0, %s406
      %s423 = sphi 0, %s407
      %s429 = sphi 0, %s431
      %s432 = sphi 0, %s429
      %s433 = sphi 0, %s432
      %s449 = sphi 0, %s433
      %s453 = sphi 0, %s453
      %s455 = sphi 0, %s453
      %s456 = sphi 0, %s455
      %s470 = sphi 0, %s456
    $region4: #{tpu_custom_call.1} parent=1 // loop_header_branch
      %29 = sbr.rel (%p27) target = $region8
    $region5: #{tpu_custom_call.1} parent=1 // loop_body
      %s31 = ssub.s32 %s26, 1
      %s32 = ssub.s32 %s26, 2
      %s33 = sadd.s32 %s26, 1
      %s35 = sadd.s32 %s34, 1
      %p38 = scmp.eq.s32.totalorder %s26, 3
      %p39 = scmp.ne.s32.totalorder %s34, %s36
      %p40 = scmp.eq.s32.totalorder %s26, 0
      %p41 = por %p39, %p40
      %p42 = scmp.ne.s32.totalorder %s34, %s36
      %p43 = scmp.eq.s32.totalorder %s31, 3
      %p44 = por %p42, %p43
      %p45 = scmp.ne.s32.totalorder %s36, %s37
      %p46 = scmp.eq.s32.totalorder %s31, 0
      %p47 = por %p45, %p46
      %p48 = scmp.ne.s32.totalorder %s36, %s37
      %p49 = scmp.eq.s32.totalorder %s32, 3
      %p50 = por %p48, %p49
      %p52 = scmp.ne.s32.totalorder %s37, %s51
      %p53 = scmp.eq.s32.totalorder %s32, 0
      %p54 = por %p52, %p53
      %s56 = sadd.s32 %s55, 1
      %p59 = scmp.eq.s32.totalorder %s26, 3
      %p60 = scmp.ne.s32.totalorder %s55, %s57
      %p61 = scmp.eq.s32.totalorder %s26, 0
      %p62 = por %p60, %p61
      %p63 = scmp.ne.s32.totalorder %s55, %s57
      %p64 = scmp.eq.s32.totalorder %s31, 3
      %p65 = por %p63, %p64
      %p66 = scmp.ne.s32.totalorder %s57, %s58
      %p67 = scmp.eq.s32.totalorder %s31, 0
      %p68 = por %p66, %p67
      %p69 = scmp.ne.s32.totalorder %s57, %s58
      %p70 = scmp.eq.s32.totalorder %s32, 3
      %p71 = por %p69, %p70
      %p73 = scmp.ne.s32.totalorder %s58, %s72
      %p74 = scmp.eq.s32.totalorder %s32, 0
      %p75 = por %p73, %p74
      %s77 = sadd.s32 %s76, 1
      %p80 = scmp.eq.s32.totalorder %s26, 3
      %p81 = scmp.ne.s32.totalorder %s76, %s78
      %p82 = scmp.eq.s32.totalorder %s26, 0
      %p83 = por %p81, %p82
      %p84 = scmp.ne.s32.totalorder %s76, %s78
      %p85 = scmp.eq.s32.totalorder %s31, 3
      %p86 = por %p84, %p85
      %p87 = scmp.ne.s32.totalorder %s78, %s79
      %p88 = scmp.eq.s32.totalorder %s31, 0
      %p89 = por %p87, %p88
      %p90 = scmp.ne.s32.totalorder %s78, %s79
      %p91 = scmp.eq.s32.totalorder %s32, 3
      %p92 = por %p90, %p91
      %p94 = scmp.ne.s32.totalorder %s79, %s93
      %p95 = scmp.eq.s32.totalorder %s32, 0
      %p96 = por %p94, %p95
      %s98 = sadd.s32 %s97, 1
      %p101 = scmp.eq.s32.totalorder %s26, 3
      %p102 = scmp.ne.s32.totalorder %s97, %s99
      %p103 = scmp.eq.s32.totalorder %s26, 0
      %p104 = por %p102, %p103
      %p105 = scmp.ne.s32.totalorder %s97, %s99
      %p106 = scmp.eq.s32.totalorder %s31, 3
      %p107 = por %p105, %p106
      %p108 = scmp.ne.s32.totalorder %s99, %s100
      %p109 = scmp.eq.s32.totalorder %s31, 0
      %p110 = por %p108, %p109
      %p111 = scmp.ne.s32.totalorder %s99, %s100
      %p112 = scmp.eq.s32.totalorder %s32, 3
      %p113 = por %p111, %p112
      %p115 = scmp.ne.s32.totalorder %s100, %s114
      %p116 = scmp.eq.s32.totalorder %s32, 0
      %p117 = por %p115, %p116
      %s119 = sadd.s32 %s118, 1
      %p122 = scmp.eq.s32.totalorder %s26, 3
      %p123 = scmp.ne.s32.totalorder %s118, %s120
      %p124 = scmp.eq.s32.totalorder %s26, 0
      %p125 = por %p123, %p124
      %p126 = scmp.ne.s32.totalorder %s118, %s120
      %p127 = scmp.eq.s32.totalorder %s31, 3
      %p128 = por %p126, %p127
      %p129 = scmp.ne.s32.totalorder %s120, %s121
      %p130 = scmp.eq.s32.totalorder %s31, 0
      %p131 = por %p129, %p130
      %p132 = scmp.ne.s32.totalorder %s120, %s121
      %p133 = scmp.eq.s32.totalorder %s32, 3
      %p134 = por %p132, %p133
      %p136 = scmp.ne.s32.totalorder %s121, %s135
      %p137 = scmp.eq.s32.totalorder %s32, 0
      %p138 = por %p136, %p137
      %s140 = sadd.s32 %s139, 1
      %p143 = scmp.eq.s32.totalorder %s26, 3
      %p144 = scmp.ne.s32.totalorder %s139, %s141
      %p145 = scmp.eq.s32.totalorder %s26, 0
      %p146 = por %p144, %p145
      %p147 = scmp.ne.s32.totalorder %s139, %s141
      %p148 = scmp.eq.s32.totalorder %s31, 3
      %p149 = por %p147, %p148
      %p150 = scmp.ne.s32.totalorder %s141, %s142
      %p151 = scmp.eq.s32.totalorder %s31, 0
      %p152 = por %p150, %p151
      %p153 = scmp.ne.s32.totalorder %s141, %s142
      %p154 = scmp.eq.s32.totalorder %s32, 3
      %p155 = por %p153, %p154
      %p157 = scmp.ne.s32.totalorder %s142, %s156
      %p158 = scmp.eq.s32.totalorder %s32, 0
      %p159 = por %p157, %p158
      %s161 = sadd.s32 %s160, 1
      %p164 = scmp.eq.s32.totalorder %s26, 3
      %p165 = scmp.ne.s32.totalorder %s160, %s162
      %p166 = scmp.eq.s32.totalorder %s26, 0
      %p167 = por %p165, %p166
      %p168 = scmp.ne.s32.totalorder %s160, %s162
      %p169 = scmp.eq.s32.totalorder %s31, 3
      %p170 = por %p168, %p169
      %p171 = scmp.ne.s32.totalorder %s162, %s163
      %p172 = scmp.eq.s32.totalorder %s31, 0
      %p173 = por %p171, %p172
      %p174 = scmp.ne.s32.totalorder %s162, %s163
      %p175 = scmp.eq.s32.totalorder %s32, 3
      %p176 = por %p174, %p175
      %p178 = scmp.ne.s32.totalorder %s163, %s177
      %p179 = scmp.eq.s32.totalorder %s32, 0
      %p180 = por %p178, %p179
      %s182 = sadd.s32 %s181, 1
      %p185 = scmp.eq.s32.totalorder %s26, 3
      %p186 = scmp.ne.s32.totalorder %s181, %s183
      %p187 = scmp.eq.s32.totalorder %s26, 0
      %p188 = por %p186, %p187
      %p189 = scmp.ne.s32.totalorder %s181, %s183
      %p190 = scmp.eq.s32.totalorder %s31, 3
      %p191 = por %p189, %p190
      %p192 = scmp.ne.s32.totalorder %s183, %s184
      %p193 = scmp.eq.s32.totalorder %s31, 0
      %p194 = por %p192, %p193
      %p195 = scmp.ne.s32.totalorder %s183, %s184
      %p196 = scmp.eq.s32.totalorder %s32, 3
      %p197 = por %p195, %p196
      %p199 = scmp.ne.s32.totalorder %s184, %s198
      %p200 = scmp.eq.s32.totalorder %s32, 0
      %p201 = por %p199, %p200
      %s203 = sadd.s32 %s202, 1
      %p206 = scmp.eq.s32.totalorder %s26, 3
      %p207 = scmp.ne.s32.totalorder %s202, %s204
      %p208 = scmp.eq.s32.totalorder %s26, 0
      %p209 = por %p207, %p208
      %p210 = scmp.ne.s32.totalorder %s202, %s204
      %p211 = scmp.eq.s32.totalorder %s31, 3
      %p212 = por %p210, %p211
      %p213 = scmp.ne.s32.totalorder %s204, %s205
      %p214 = scmp.eq.s32.totalorder %s31, 0
      %p215 = por %p213, %p214
      %p216 = scmp.ne.s32.totalorder %s204, %s205
      %p217 = scmp.eq.s32.totalorder %s32, 3
      %p218 = por %p216, %p217
      %p220 = scmp.ne.s32.totalorder %s205, %s219
      %p221 = scmp.eq.s32.totalorder %s32, 0
      %p222 = por %p220, %p221
      %s224 = sadd.s32 %s223, 1
      %p227 = scmp.eq.s32.totalorder %s26, 3
      %p228 = scmp.ne.s32.totalorder %s223, %s225
      %p229 = scmp.eq.s32.totalorder %s26, 0
      %p230 = por %p228, %p229
      %p231 = scmp.ne.s32.totalorder %s223, %s225
      %p232 = scmp.eq.s32.totalorder %s31, 3
      %p233 = por %p231, %p232
      %p234 = scmp.ne.s32.totalorder %s225, %s226
      %p235 = scmp.eq.s32.totalorder %s31, 0
      %p236 = por %p234, %p235
      %p237 = scmp.ne.s32.totalorder %s225, %s226
      %p238 = scmp.eq.s32.totalorder %s32, 3
      %p239 = por %p237, %p238
      %p241 = scmp.ne.s32.totalorder %s226, %s240
      %p242 = scmp.eq.s32.totalorder %s32, 0
      %p243 = por %p241, %p242
      %s245 = sadd.s32 %s244, 1
      %p248 = scmp.eq.s32.totalorder %s26, 3
      %p249 = scmp.ne.s32.totalorder %s244, %s246
      %p250 = scmp.eq.s32.totalorder %s26, 0
      %p251 = por %p249, %p250
      %p252 = scmp.ne.s32.totalorder %s244, %s246
      %p253 = scmp.eq.s32.totalorder %s31, 3
      %p254 = por %p252, %p253
      %p255 = scmp.ne.s32.totalorder %s246, %s247
      %p256 = scmp.eq.s32.totalorder %s31, 0
      %p257 = por %p255, %p256
      %p258 = scmp.ne.s32.totalorder %s246, %s247
      %p259 = scmp.eq.s32.totalorder %s32, 3
      %p260 = por %p258, %p259
      %p262 = scmp.ne.s32.totalorder %s247, %s261
      %p263 = scmp.eq.s32.totalorder %s32, 0
      %p264 = por %p262, %p263
      %s266 = sadd.s32 %s265, 1
      %p269 = scmp.eq.s32.totalorder %s26, 3
      %p270 = scmp.ne.s32.totalorder %s265, %s267
      %p271 = scmp.eq.s32.totalorder %s26, 0
      %p272 = por %p270, %p271
      %p273 = scmp.ne.s32.totalorder %s265, %s267
      %p274 = scmp.eq.s32.totalorder %s31, 3
      %p275 = por %p273, %p274
      %p276 = scmp.ne.s32.totalorder %s267, %s268
      %p277 = scmp.eq.s32.totalorder %s31, 0
      %p278 = por %p276, %p277
      %p279 = scmp.ne.s32.totalorder %s267, %s268
      %p280 = scmp.eq.s32.totalorder %s32, 3
      %p281 = por %p279, %p280
      %p283 = scmp.ne.s32.totalorder %s268, %s282
      %p284 = scmp.eq.s32.totalorder %s32, 0
      %p285 = por %p283, %p284
      %s287 = sadd.s32 %s286, 1
      %p290 = scmp.eq.s32.totalorder %s26, 3
      %p291 = scmp.ne.s32.totalorder %s286, %s288
      %p292 = scmp.eq.s32.totalorder %s26, 0
      %p293 = por %p291, %p292
      %p294 = scmp.ne.s32.totalorder %s286, %s288
      %p295 = scmp.eq.s32.totalorder %s31, 3
      %p296 = por %p294, %p295
      %p297 = scmp.ne.s32.totalorder %s288, %s289
      %p298 = scmp.eq.s32.totalorder %s31, 0
      %p299 = por %p297, %p298
      %p300 = scmp.ne.s32.totalorder %s288, %s289
      %p301 = scmp.eq.s32.totalorder %s32, 3
      %p302 = por %p300, %p301
      %p304 = scmp.ne.s32.totalorder %s289, %s303
      %p305 = scmp.eq.s32.totalorder %s32, 0
      %p306 = por %p304, %p305
      %s308 = sadd.s32 %s307, 1
      %p311 = scmp.eq.s32.totalorder %s26, 3
      %p312 = scmp.ne.s32.totalorder %s307, %s309
      %p313 = scmp.eq.s32.totalorder %s26, 0
      %p314 = por %p312, %p313
      %p315 = scmp.ne.s32.totalorder %s307, %s309
      %p316 = scmp.eq.s32.totalorder %s31, 3
      %p317 = por %p315, %p316
      %p318 = scmp.ne.s32.totalorder %s309, %s310
      %p319 = scmp.eq.s32.totalorder %s31, 0
      %p320 = por %p318, %p319
      %p321 = scmp.ne.s32.totalorder %s309, %s310
      %p322 = scmp.eq.s32.totalorder %s32, 3
      %p323 = por %p321, %p322
      %p325 = scmp.ne.s32.totalorder %s310, %s324
      %p326 = scmp.eq.s32.totalorder %s32, 0
      %p327 = por %p325, %p326
      %s329 = sadd.s32 %s328, 1
      %p332 = scmp.eq.s32.totalorder %s26, 3
      %p333 = scmp.ne.s32.totalorder %s328, %s330
      %p334 = scmp.eq.s32.totalorder %s26, 0
      %p335 = por %p333, %p334
      %p336 = scmp.ne.s32.totalorder %s328, %s330
      %p337 = scmp.eq.s32.totalorder %s31, 3
      %p338 = por %p336, %p337
      %p339 = scmp.ne.s32.totalorder %s330, %s331
      %p340 = scmp.eq.s32.totalorder %s31, 0
      %p341 = por %p339, %p340
      %p342 = scmp.ne.s32.totalorder %s330, %s331
      %p343 = scmp.eq.s32.totalorder %s32, 3
      %p344 = por %p342, %p343
      %p346 = scmp.ne.s32.totalorder %s331, %s345
      %p347 = scmp.eq.s32.totalorder %s32, 0
      %p348 = por %p346, %p347
      %s349 = ssub.s32 %s26, %s33
      %p350 = scmp.eq.s32.totalorder %s349, 0
      %s352 = sadd.s32 %s351, 1
      %s353 = scalar_select %p350, %s351, %s352
      %p356 = pneg %p350
      %p357 = scmp.eq.s32.totalorder %s26, 3
      %p358 = por %p356, %p357
      %p359 = scmp.ne.s32.totalorder %s351, %s354
      %p360 = scmp.eq.s32.totalorder %s26, 0
      %p361 = por %p359, %p360
      %p362 = scmp.ne.s32.totalorder %s351, %s354
      %p363 = scmp.eq.s32.totalorder %s31, 3
      %p364 = por %p362, %p363
      %p365 = scmp.ne.s32.totalorder %s354, %s355
      %p366 = scmp.eq.s32.totalorder %s31, 0
      %p367 = por %p365, %p366
      %p368 = scmp.ne.s32.totalorder %s354, %s355
      %p369 = scmp.eq.s32.totalorder %s32, 3
      %p370 = por %p368, %p369
      %p372 = scmp.ne.s32.totalorder %s355, %s371
      %p373 = scmp.eq.s32.totalorder %s32, 0
      %p374 = por %p372, %p373
      %s375 = ssub.s32 %s26, %s33
      %p376 = scmp.eq.s32.totalorder %s375, 0
      %s378 = sadd.s32 %s377, 1
      %s379 = scalar_select %p376, %s377, %s378
      %p382 = pneg %p376
      %p383 = scmp.eq.s32.totalorder %s26, 3
      %p384 = por %p382, %p383
      %p385 = scmp.ne.s32.totalorder %s377, %s380
      %p386 = scmp.eq.s32.totalorder %s26, 0
      %p387 = por %p385, %p386
      %p388 = scmp.ne.s32.totalorder %s377, %s380
      %p389 = scmp.eq.s32.totalorder %s31, 3
      %p390 = por %p388, %p389
      %p391 = scmp.ne.s32.totalorder %s380, %s381
      %p392 = scmp.eq.s32.totalorder %s31, 0
      %p393 = por %p391, %p392
      %p394 = scmp.ne.s32.totalorder %s380, %s381
      %p395 = scmp.eq.s32.totalorder %s32, 3
      %p396 = por %p394, %p395
      %p398 = scmp.ne.s32.totalorder %s381, %s397
      %p399 = scmp.eq.s32.totalorder %s32, 0
      %p400 = por %p398, %p399
      %s401 = ssub.s32 %s26, %s33
      %p402 = scmp.eq.s32.totalorder %s401, 0
      %s404 = sadd.s32 %s403, 1
      %s405 = scalar_select %p402, %s403, %s404
      %p408 = pneg %p402
      %p409 = scmp.eq.s32.totalorder %s26, 3
      %p410 = por %p408, %p409
      %p411 = scmp.ne.s32.totalorder %s403, %s406
      %p412 = scmp.eq.s32.totalorder %s26, 0
      %p413 = por %p411, %p412
      %p414 = scmp.ne.s32.totalorder %s403, %s406
      %p415 = scmp.eq.s32.totalorder %s31, 3
      %p416 = por %p414, %p415
      %p417 = scmp.ne.s32.totalorder %s406, %s407
      %p418 = scmp.eq.s32.totalorder %s31, 0
      %p419 = por %p417, %p418
      %p420 = scmp.ne.s32.totalorder %s406, %s407
      %p421 = scmp.eq.s32.totalorder %s32, 3
      %p422 = por %p420, %p421
      %p424 = scmp.ne.s32.totalorder %s407, %s423
      %p425 = scmp.eq.s32.totalorder %s32, 0
      %p426 = por %p424, %p425
      %s427 = ssub.s32 %s26, %s33
      %p428 = scmp.eq.s32.totalorder %s427, 0
      %s430 = sadd.s32 %s429, 1
      %s431 = scalar_select %p428, %s429, %s430
      %p434 = pneg %p428
      %p435 = scmp.eq.s32.totalorder %s26, 3
      %p436 = por %p434, %p435
      %p437 = scmp.ne.s32.totalorder %s429, %s432
      %p438 = scmp.eq.s32.totalorder %s26, 0
      %p439 = por %p437, %p438
      %p440 = scmp.ne.s32.totalorder %s429, %s432
      %p441 = scmp.eq.s32.totalorder %s31, 3
      %p442 = por %p440, %p441
      %p443 = scmp.ne.s32.totalorder %s432, %s433
      %p444 = scmp.eq.s32.totalorder %s31, 0
      %p445 = por %p443, %p444
      %p446 = scmp.ne.s32.totalorder %s432, %s433
      %p447 = scmp.eq.s32.totalorder %s32, 3
      %p448 = por %p446, %p447
      %p450 = scmp.ne.s32.totalorder %s433, %s449
      %p451 = scmp.eq.s32.totalorder %s32, 0
      %p452 = por %p450, %p451
      %s454 = sadd.s32 %s453, 1
      %p457 = scmp.eq.s32.totalorder %s26, 3
      %p458 = scmp.ne.s32.totalorder %s453, %s455
      %p459 = scmp.eq.s32.totalorder %s26, 0
      %p460 = por %p458, %p459
      %p461 = scmp.ne.s32.totalorder %s453, %s455
      %p462 = scmp.eq.s32.totalorder %s31, 3
      %p463 = por %p461, %p462
      %p464 = scmp.ne.s32.totalorder %s455, %s456
      %p465 = scmp.eq.s32.totalorder %s31, 0
      %p466 = por %p464, %p465
      %p467 = scmp.ne.s32.totalorder %s455, %s456
      %p468 = scmp.eq.s32.totalorder %s32, 3
      %p469 = por %p467, %p468
      %p471 = scmp.ne.s32.totalorder %s456, %s470
      %p472 = scmp.eq.s32.totalorder %s32, 0
      %p473 = por %p471, %p472
      %p474 = scmp.le.s32.totalorder 1, %s26
      %p475 = scmp.lt.s32.totalorder %s26, 5
      %p476 = pnand %p474, %p475
      %p477 = pneg %p476
      // Predicated region
      $region9: #{tpu_custom_call.1} parent=5 // pred_check
        _
      $region10: #{tpu_custom_call.1} parent=5 // pred_check_branch
        %479 = sbr.rel (%p476) target = $region12
      $region11: #{tpu_custom_call.1} parent=5 // pred_region
        %s480 = ssub.s32 %s26, 1
        // Predicated region
        $region13: #{tpu_custom_call.1} parent=11 // pred_check
          %p481 = pneg %p47
        $region14: #{tpu_custom_call.1} parent=11 // pred_check_branch
          %483 = sbr.rel (%p481) target = $region16
        $region15: #{tpu_custom_call.1} parent=11 // pred_region
          _
        $region16: #{tpu_custom_call.1} parent=11 // pred_fallthru
          _
        // Predicated region
        $region17: #{tpu_custom_call.1} parent=11 // pred_check
          %p484 = pneg %p68
        $region18: #{tpu_custom_call.1} parent=11 // pred_check_branch
          %486 = sbr.rel (%p484) target = $region20
        $region19: #{tpu_custom_call.1} parent=11 // pred_region
          _
        $region20: #{tpu_custom_call.1} parent=11 // pred_fallthru
          _
        // Predicated region
        $region21: #{tpu_custom_call.1} parent=11 // pred_check
          %p487 = pneg %p89
        $region22: #{tpu_custom_call.1} parent=11 // pred_check_branch
          %489 = sbr.rel (%p487) target = $region24
        $region23: #{tpu_custom_call.1} parent=11 // pred_region
          _
        $region24: #{tpu_custom_call.1} parent=11 // pred_fallthru
          _
        // Predicated region
        $region25: #{tpu_custom_call.1} parent=11 // pred_check
          %p490 = pneg %p110
        $region26: #{tpu_custom_call.1} parent=11 // pred_check_branch
          %492 = sbr.rel (%p490) target = $region28
        $region27: #{tpu_custom_call.1} parent=11 // pred_region
          _
        $region28: #{tpu_custom_call.1} parent=11 // pred_fallthru
          _
        // Predicated region
        $region29: #{tpu_custom_call.1} parent=11 // pred_check
          %p493 = pneg %p131
        $region30: #{tpu_custom_call.1} parent=11 // pred_check_branch
          %495 = sbr.rel (%p493) target = $region32
        $region31: #{tpu_custom_call.1} parent=11 // pred_region
          _
        $region32: #{tpu_custom_call.1} parent=11 // pred_fallthru
          _
        // Predicated region
        $region33: #{tpu_custom_call.1} parent=11 // pred_check
          %p496 = pneg %p152
        $region34: #{tpu_custom_call.1} parent=11 // pred_check_branch
          %498 = sbr.rel (%p496) target = $region36
        $region35: #{tpu_custom_call.1} parent=11 // pred_region
          _
        $region36: #{tpu_custom_call.1} parent=11 // pred_fallthru
          _
        // Predicated region
        $region37: #{tpu_custom_call.1} parent=11 // pred_check
          %p499 = pneg %p173
        $region38: #{tpu_custom_call.1} parent=11 // pred_check_branch
          %501 = sbr.rel (%p499) target = $region40
        $region39: #{tpu_custom_call.1} parent=11 // pred_region
          _
        $region40: #{tpu_custom_call.1} parent=11 // pred_fallthru
          _
        // Predicated region
        $region41: #{tpu_custom_call.1} parent=11 // pred_check
          %p502 = pneg %p194
        $region42: #{tpu_custom_call.1} parent=11 // pred_check_branch
          %504 = sbr.rel (%p502) target = $region44
        $region43: #{tpu_custom_call.1} parent=11 // pred_region
          _
        $region44: #{tpu_custom_call.1} parent=11 // pred_fallthru
          _
        // Predicated region
        $region45: #{tpu_custom_call.1} parent=11 // pred_check
          %p505 = pneg %p215
        $region46: #{tpu_custom_call.1} parent=11 // pred_check_branch
          %507 = sbr.rel (%p505) target = $region48
        $region47: #{tpu_custom_call.1} parent=11 // pred_region
          _
        $region48: #{tpu_custom_call.1} parent=11 // pred_fallthru
          _
        // Predicated region
        $region49: #{tpu_custom_call.1} parent=11 // pred_check
          %p508 = pneg %p236
        $region50: #{tpu_custom_call.1} parent=11 // pred_check_branch
          %510 = sbr.rel (%p508) target = $region52
        $region51: #{tpu_custom_call.1} parent=11 // pred_region
          _
        $region52: #{tpu_custom_call.1} parent=11 // pred_fallthru
          _
        // Predicated region
        $region53: #{tpu_custom_call.1} parent=11 // pred_check
          %p511 = pneg %p257
        $region54: #{tpu_custom_call.1} parent=11 // pred_check_branch
          %513 = sbr.rel (%p511) target = $region56
        $region55: #{tpu_custom_call.1} parent=11 // pred_region
          _
        $region56: #{tpu_custom_call.1} parent=11 // pred_fallthru
          _
        // Predicated region
        $region57: #{tpu_custom_call.1} parent=11 // pred_check
          %p514 = pneg %p278
        $region58: #{tpu_custom_call.1} parent=11 // pred_check_branch
          %516 = sbr.rel (%p514) target = $region60
        $region59: #{tpu_custom_call.1} parent=11 // pred_region
          _
        $region60: #{tpu_custom_call.1} parent=11 // pred_fallthru
          _
        // Predicated region
        $region61: #{tpu_custom_call.1} parent=11 // pred_check
          %p517 = pneg %p299
        $region62: #{tpu_custom_call.1} parent=11 // pred_check_branch
          %519 = sbr.rel (%p517) target = $region64
        $region63: #{tpu_custom_call.1} parent=11 // pred_region
          _
        $region64: #{tpu_custom_call.1} parent=11 // pred_fallthru
          _
        // Predicated region
        $region65: #{tpu_custom_call.1} parent=11 // pred_check
          %p520 = pneg %p320
        $region66: #{tpu_custom_call.1} parent=11 // pred_check_branch
          %522 = sbr.rel (%p520) target = $region68
        $region67: #{tpu_custom_call.1} parent=11 // pred_region
          _
        $region68: #{tpu_custom_call.1} parent=11 // pred_fallthru
          _
        // Predicated region
        $region69: #{tpu_custom_call.1} parent=11 // pred_check
          %p523 = pneg %p341
        $region70: #{tpu_custom_call.1} parent=11 // pred_check_branch
          %525 = sbr.rel (%p523) target = $region72
        $region71: #{tpu_custom_call.1} parent=11 // pred_region
          _
        $region72: #{tpu_custom_call.1} parent=11 // pred_fallthru
          _
      $region12: #{tpu_custom_call.1} parent=5 // pred_fallthru
        _
      %p526 = scmp.lt.s32.totalorder %s26, 4
      // Predicated region
      $region73: #{tpu_custom_call.1} parent=5 // pred_check
        %p527 = pneg %p526
      $region74: #{tpu_custom_call.1} parent=5 // pred_check_branch
        %529 = sbr.rel (%p527) target = $region76
      $region75: #{tpu_custom_call.1} parent=5 // pred_region
        // Predicated region
        $region77: #{tpu_custom_call.1} parent=75 // pred_check
          %p530 = pneg %p361
        $region78: #{tpu_custom_call.1} parent=75 // pred_check_branch
          %532 = sbr.rel (%p530) target = $region80
        $region79: #{tpu_custom_call.1} parent=75 // pred_region
          %p533 = scmp.lt.s32.totalorder %s26, 3
          %s534 = scalar_select %p533, %s26, 3
          %s535 = smul.addr %s534, 4
          %s536 = smul.addr %s535, 8
          %s537 = scalar_lea.vmem %s15, %s536
        $region80: #{tpu_custom_call.1} parent=75 // pred_fallthru
          _
        // Predicated region
        $region81: #{tpu_custom_call.1} parent=75 // pred_check
          %p538 = pneg %p387
        $region82: #{tpu_custom_call.1} parent=75 // pred_check_branch
          %540 = sbr.rel (%p538) target = $region84
        $region83: #{tpu_custom_call.1} parent=75 // pred_region
          %p541 = scmp.lt.s32.totalorder %s26, 3
          %s542 = scalar_select %p541, %s26, 3
          %s543 = scalar_lea.vmem %s16, %s542
        $region84: #{tpu_custom_call.1} parent=75 // pred_fallthru
          _
        // Predicated region
        $region85: #{tpu_custom_call.1} parent=75 // pred_check
          %p544 = pneg %p413
        $region86: #{tpu_custom_call.1} parent=75 // pred_check_branch
          %546 = sbr.rel (%p544) target = $region88
        $region87: #{tpu_custom_call.1} parent=75 // pred_region
          %p547 = scmp.lt.s32.totalorder %s26, 3
          %s548 = scalar_select %p547, %s26, 3
          %s549 = smul.addr %s548, 8
          %s550 = smul.addr %s549, 8
          %s551 = scalar_lea.vmem %s17, %s550
        $region88: #{tpu_custom_call.1} parent=75 // pred_fallthru
          _
        // Predicated region
        $region89: #{tpu_custom_call.1} parent=75 // pred_check
          %p552 = pneg %p439
        $region90: #{tpu_custom_call.1} parent=75 // pred_check_branch
          %554 = sbr.rel (%p552) target = $region92
        $region91: #{tpu_custom_call.1} parent=75 // pred_region
          %p555 = scmp.lt.s32.totalorder %s26, 3
          %s556 = scalar_select %p555, %s26, 3
          %s557 = scalar_lea.vmem %s18, %s556
        $region92: #{tpu_custom_call.1} parent=75 // pred_fallthru
          _
      $region76: #{tpu_custom_call.1} parent=5 // pred_fallthru
        _
      %p558 = scmp.le.s32.totalorder 1, %s26
      %p559 = scmp.lt.s32.totalorder %s26, 5
      %p560 = pnand %p558, %p559
      %p561 = pneg %p560
      // Predicated region
      $region93: #{tpu_custom_call.1} parent=5 // pred_check
        _
      $region94: #{tpu_custom_call.1} parent=5 // pred_check_branch
        %563 = sbr.rel (%p560) target = $region96
      $region95: #{tpu_custom_call.1} parent=5 // pred_region
        %s564 = ssub.s32 %s26, 1
        %p565 = pneg %p47
        %p566 = pneg %p44
        %p567 = pneg %p68
        %p568 = pneg %p65
        %p569 = pneg %p89
        %p570 = pneg %p86
        %p571 = pneg %p110
        %p572 = pneg %p107
        %p573 = pneg %p131
        %p574 = pneg %p128
        %p575 = pneg %p152
        %p576 = pneg %p149
        %p577 = pneg %p173
        %p578 = pneg %p170
        %p579 = pneg %p194
        %p580 = pneg %p191
        %p581 = pneg %p215
        %p582 = pneg %p212
        %p583 = pneg %p236
        %p584 = pneg %p233
        %p585 = pneg %p257
        %p586 = pneg %p254
        %p587 = pneg %p278
        %p588 = pneg %p275
        %p589 = pneg %p299
        %p590 = pneg %p296
        %p591 = pneg %p320
        %p592 = pneg %p317
        %p593 = pneg %p341
        %p594 = pneg %p338
        %p595 = scmp.lt.s32.totalorder %s31, 3
        %s596 = scalar_select %p595, %s31, 3
        %s597 = smul.addr %s596, 4
        %s598 = smul.addr %s597, 8
        %s599 = scalar_lea.vmem %s15, %s598
        %p600 = pneg %p367
        %p601 = pneg %p364
        %p602 = scmp.lt.s32.totalorder %s31, 3
        %s603 = scalar_select %p602, %s31, 3
        %s604 = scalar_lea.vmem %s16, %s603
        %p605 = pneg %p393
        %p606 = pneg %p390
        %p607 = scmp.lt.s32.totalorder %s31, 3
        %s608 = scalar_select %p607, %s31, 3
        %s609 = smul.addr %s608, 8
        %s610 = smul.addr %s609, 8
        %s611 = scalar_lea.vmem %s17, %s610
        %p612 = pneg %p419
        %p613 = pneg %p416
        %p614 = scmp.lt.s32.totalorder %s31, 3
        %s615 = scalar_select %p614, %s31, 3
        %s616 = scalar_lea.vmem %s18, %s615
        %p617 = pneg %p445
        %p618 = pneg %p442
        %p619 = pneg %p466
        %p620 = pneg %p463
        %p621 = scmp.lt.s32.totalorder %s31, 3
        %s622 = scalar_select %p621, %s31, 3
        %s623 = smul.addr %s622, 4
        %s624 = smul.addr %s623, 8
        %s625 = scalar_lea.vmem %s15, %s624
        %p626 = scmp.lt.s32.totalorder %s31, 3
        %s627 = scalar_select %p626, %s31, 3
        %s628 = scalar_lea.vmem %s16, %s627
        %p629 = scmp.lt.s32.totalorder %s31, 3
        %s630 = scalar_select %p629, %s31, 3
        %s631 = smul.addr %s630, 8
        %s632 = smul.addr %s631, 8
        %s633 = scalar_lea.vmem %s17, %s632
        %p634 = scmp.lt.s32.totalorder %s31, 3
        %s635 = scalar_select %p634, %s31, 3
        %s636 = scalar_lea.vmem %s18, %s635
        %p637 = scmp.eq.s32.totalorder %s31, 0
        // Predicated region
        $region97: #{tpu_custom_call.1} parent=95 // pred_check
          %p638 = pneg %p637
        $region98: #{tpu_custom_call.1} parent=95 // pred_check_branch
          %640 = sbr.rel (%p638) target = $region100
        $region99: #{tpu_custom_call.1} parent=95 // pred_region
          %v641 = vld [vmem:[%s0] sm:$0xff]
          %v642 = vld [vmem:[%s1] sm:$0x1]
          %v643 = vld [vmem:[%s2] sm:$0x1]
          %vm644 = vcmask 261120
          %v645 = vsel %vm644, %v641, 0.0
          %646 = vadd.xlane.f32.xlu0 %v645
          %v647 = vpop.xlane.xlu0 %646
          %v648 = vrcp.pop 32.0
          %v649 = vmul.f32 32.0, %v648
          %v650 = vsub.f32 1.0, %v649
          %v651 = vmul.f32 %v648, %v650
          %v652 = vadd.f32 %v648, %v651
          %vm653 = vweird.f32 %v648
          %v654 = vsel %vm653, %v648, %v652
          %v655 = vmul.f32 %v647, %v654
          %v656 = vsub.f32 %v641, %v655
          %v657 = vmul.f32 %v656, %v656
          %v658 = vsel %vm644, %v657, 0.0
          %659 = vadd.xlane.f32.xlu0 %v658
          %v660 = vpop.xlane.xlu0 %659
          %v661 = vmul.f32 %v660, %v654
          %v662 = vadd.f32 %v661, 1e-05
          %v663 = vrsqrt.pop %v662
          %v664 = vmul.f32 %v663, %v662
          %v665 = vmul.f32 %v664, %v663
          %v666 = vmul.f32 0.5, %v665
          %v667 = vsub.f32 1.5, %v666
          %v668 = vmul.f32 %v663, %v667
          %vm669 = vweird.f32 %v662
          %vm670 = vweird.f32 %v663
          %vm671 = vmor %vm669, %vm670
          %v672 = vsel %vm671, %v663, %v668
          %v673 = vmul.f32 %v656, %v672
          %v675 = vperm.slane %v642, 0
          %v677 = vmul.f32 %v673, %v675
          %v679 = vperm.slane %v643, 0
          %v681 = vadd.f32 %v677, %v679
          %v682 = vld [vmem:[%s5] sm:$0xff]
          %v683 = vld [vmem:[%s5 + $0x8] sm:$0xff]
          %v684 = vld [vmem:[%s5 + $0x10] sm:$0xff]
          %v685 = vld [vmem:[%s5 + $0x18] sm:$0xff]
          %v686 = vld [vmem:[%s6] sm:$0x1]
          %v688 = vperm.slane %v686, 0
          %v691 = vsel %vm644, %v681, 0
          %693 = vmatpush.msra.mxu0 0.0
          %694 = vmatpush.msra.mxu0 0.0
          %695 = vmatpush.msra.mxu0 0.0
          %696 = vmatpush.msra.mxu0 0.0
          %697 = vmatpush.msra.mxu0 0.0
          %698 = vmatpush.msra.mxu0 0.0
          %699 = vmatpush.msra.mxu0 0.0
          %700 = vmatpush.msra.mxu0 0.0
          %701 = vmatpush.msra.mxu0 0.0
          %702 = vmatpush.msra.mxu0 0.0
          %703 = vmatpush.msra.mxu0 0.0
          %704 = vmatpush.msra.mxu0 0.0
          %705 = vmatpush.msra.mxu0 %v685
          %706 = vmatpush.msra.mxu0 %v684
          %707 = vmatpush.msra.mxu0 %v683
          %708 = vmatpush.msra.mxu0 %v682
          %709 = vmatmul.f32.gmra.mxu0 %v691
          %v710 = vpop.f32.mrf.mxu0
          %v711 = vadd.f32 %v688, %v710
          %712 = vdwg.mxu0
          %v713 = vld [vmem:[%s7] sm:$0xff]
          %v714 = vld [vmem:[%s7 + $0x8] sm:$0xff]
          %v715 = vld [vmem:[%s7 + $0x10] sm:$0xff]
          %v716 = vld [vmem:[%s7 + $0x18] sm:$0xff]
          %v717 = vld [vmem:[%s8] sm:$0x1]
          %v719 = vperm.slane %v717, 0
          %721 = vmatpush.msra.mxu0 0.0
          %722 = vmatpush.msra.mxu0 0.0
          %723 = vmatpush.msra.mxu0 0.0
          %724 = vmatpush.msra.mxu0 0.0
          %725 = vmatpush.msra.mxu0 0.0
          %726 = vmatpush.msra.mxu0 0.0
          %727 = vmatpush.msra.mxu0 0.0
          %728 = vmatpush.msra.mxu0 0.0
          %729 = vmatpush.msra.mxu0 0.0
          %730 = vmatpush.msra.mxu0 0.0
          %731 = vmatpush.msra.mxu0 0.0
          %732 = vmatpush.msra.mxu0 0.0
          %733 = vmatpush.msra.mxu0 %v716
          %734 = vmatpush.msra.mxu0 %v715
          %735 = vmatpush.msra.mxu0 %v714
          %736 = vmatpush.msra.mxu0 %v713
          %737 = vmatmul.f32.gmra.mxu0 %v691
          %v738 = vpop.f32.mrf.mxu0
          %v739 = vadd.f32 %v719, %v738
          %740 = vdwg.mxu0
          %v741 = vld [vmem:[%s9] sm:$0xff]
          %v742 = vld [vmem:[%s9 + $0x8] sm:$0xff]
          %v743 = vld [vmem:[%s9 + $0x10] sm:$0xff]
          %v744 = vld [vmem:[%s9 + $0x18] sm:$0xff]
          %v745 = vld [vmem:[%s10] sm:$0x1]
          %v747 = vperm.slane %v745, 0
          %749 = vmatpush.msra.mxu0 0.0
          %750 = vmatpush.msra.mxu0 0.0
          %751 = vmatpush.msra.mxu0 0.0
          %752 = vmatpush.msra.mxu0 0.0
          %753 = vmatpush.msra.mxu0 0.0
          %754 = vmatpush.msra.mxu0 0.0
          %755 = vmatpush.msra.mxu0 0.0
          %756 = vmatpush.msra.mxu0 0.0
          %757 = vmatpush.msra.mxu0 0.0
          %758 = vmatpush.msra.mxu0 0.0
          %759 = vmatpush.msra.mxu0 0.0
          %760 = vmatpush.msra.mxu0 0.0
          %761 = vmatpush.msra.mxu0 %v744
          %762 = vmatpush.msra.mxu0 %v743
          %763 = vmatpush.msra.mxu0 %v742
          %764 = vmatpush.msra.mxu0 %v741
          %765 = vmatmul.f32.gmra.mxu0 %v691
          %v766 = vpop.f32.mrf.mxu0
          %v767 = vadd.f32 %v747, %v766
          %768 = vdwg.mxu0
          %v769 = vlaneseq
          %v770 = vshrl.u32 %v769, 7
          %v771 = vlaneseq
          %v772 = vand.u32 %v771, 127
          %vm773 = vcmp.gt.s32.totalorder %v772, %v770
          %v774 = vsel %vm773, -1e+09, 0.0
          %vm775 = vcmask 64512
          %v777 = vsel %vm775, %v711, 0
          %v780 = vsel %vm775, %v739, 0
          %782 = vmatpush.xpose.msra.mxu0 0.0
          %783 = vmatpush.xpose.msra.mxu0 0.0
          %784 = vmatpush.xpose.msra.mxu0 0.0
          %785 = vmatpush.xpose.msra.mxu0 0.0
          %786 = vmatpush.xpose.msra.mxu0 0.0
          %787 = vmatpush.xpose.msra.mxu0 0.0
          %788 = vmatpush.xpose.msra.mxu0 0.0
          %789 = vmatpush.xpose.msra.mxu0 0.0
          %790 = vmatpush.xpose.msra.mxu0 0.0
          %791 = vmatpush.xpose.msra.mxu0 0.0
          %792 = vmatpush.xpose.msra.mxu0 0.0
          %793 = vmatpush.xpose.msra.mxu0 0.0
          %794 = vmatpush.xpose.msra.mxu0 0.0
          %795 = vmatpush.xpose.msra.mxu0 0.0
          %796 = vmatpush.xpose.msra.mxu0 0.0
          %797 = vmatpush.xpose.msra.mxu0 %v780
          %798 = vmatmul.f32.gmra.mxu0 %v777
          %v799 = vpop.f32.mrf.mxu0
          %v800 = vadd.f32 0.0, %v799
          %801 = vdwg.mxu0
          %v802 = vmul.f32 %v800, 0.35355338
          %v803 = vadd.f32 %v802, %v774
          %v804 = vsel %vm775, %v803, -inf
          %805 = vmax.xlane.f32.xlu0 %v804
          %v806 = vpop.xlane.xlu0 %805
          %v807 = vsub.f32 %v803, %v806
          %v808 = vmul.f32 %v807, 1.442695
          %v809 = vpow.pop %v808
          %v810 = vsel %vm775, %v809, 0.0
          %811 = vadd.xlane.f32.xlu0 %v810
          %v812 = vpop.xlane.xlu0 %811
          %v813 = vrcp.pop %v812
          %v814 = vmul.f32 %v812, %v813
          %v815 = vsub.f32 1.0, %v814
          %v816 = vmul.f32 %v813, %v815
          %v817 = vadd.f32 %v813, %v816
          %vm818 = vweird.f32 %v812
          %vm819 = vweird.f32 %v813
          %vm820 = vmor %vm818, %vm819
          %v821 = vsel %vm820, %v813, %v817
          %v822 = vand.u32 2147483647, %v812
          %vm823 = vcmp.eq.f32.partialorder %v822, 8.507059e+37
          %v824 = vand.u32 %v812, 2147483648
          %v825 = vor.u32 1.1754944e-38, %v824
          %v826 = vsel %vm823, %v825, %v821
          %v827 = vmul.f32 %v809, %v826
          %v829 = vsel %vm775, %v827, 0
          %831 = vmatpush.msra.mxu0 0.0
          %832 = vmatpush.msra.mxu0 0.0
          %833 = vmatpush.msra.mxu0 0.0
          %834 = vmatpush.msra.mxu0 0.0
          %835 = vmatpush.msra.mxu0 0.0
          %836 = vmatpush.msra.mxu0 0.0
          %837 = vmatpush.msra.mxu0 0.0
          %838 = vmatpush.msra.mxu0 0.0
          %839 = vmatpush.msra.mxu0 0.0
          %840 = vmatpush.msra.mxu0 0.0
          %841 = vmatpush.msra.mxu0 0.0
          %842 = vmatpush.msra.mxu0 0.0
          %843 = vmatpush.msra.mxu0 0.0
          %844 = vmatpush.msra.mxu0 0.0
          %845 = vmatpush.msra.mxu0 0.0
          %846 = vmatpush.msra.mxu0 %v767
          %847 = vmatmul.f32.gmra.mxu0 %v829
          %v848 = vpop.f32.mrf.mxu0
          %v849 = vadd.f32 0.0, %v848
          %850 = vdwg.mxu0
          %851 = vrot.lane.b32.xlu0 %v711, 120
          %v852 = vpop.permute.xlu0 %851
          %853 = vrot.lane.b32.xlu0 %v739, 120
          %v854 = vpop.permute.xlu0 %853
          %v855 = vsel %vm775, %v852, 0
          %v857 = vsel %vm775, %v854, 0
          %859 = vmatpush.xpose.msra.mxu0 0.0
          %860 = vmatpush.xpose.msra.mxu0 0.0
          %861 = vmatpush.xpose.msra.mxu0 0.0
          %862 = vmatpush.xpose.msra.mxu0 0.0
          %863 = vmatpush.xpose.msra.mxu0 0.0
          %864 = vmatpush.xpose.msra.mxu0 0.0
          %865 = vmatpush.xpose.msra.mxu0 0.0
          %866 = vmatpush.xpose.msra.mxu0 0.0
          %867 = vmatpush.xpose.msra.mxu0 0.0
          %868 = vmatpush.xpose.msra.mxu0 0.0
          %869 = vmatpush.xpose.msra.mxu0 0.0
          %870 = vmatpush.xpose.msra.mxu0 0.0
          %871 = vmatpush.xpose.msra.mxu0 0.0
          %872 = vmatpush.xpose.msra.mxu0 0.0
          %873 = vmatpush.xpose.msra.mxu0 0.0
          %874 = vmatpush.xpose.msra.mxu0 %v857
          %875 = vmatmul.f32.gmra.mxu0 %v855
          %v876 = vpop.f32.mrf.mxu0
          %v877 = vadd.f32 0.0, %v876
          %878 = vdwg.mxu0
          %v879 = vmul.f32 %v877, 0.35355338
          %v880 = vadd.f32 %v879, %v774
          %v881 = vsel %vm775, %v880, -inf
          %882 = vmax.xlane.f32.xlu0 %v881
          %v883 = vpop.xlane.xlu0 %882
          %v884 = vsub.f32 %v880, %v883
          %v885 = vmul.f32 %v884, 1.442695
          %v886 = vpow.pop %v885
          %v887 = vsel %vm775, %v886, 0.0
          %888 = vadd.xlane.f32.xlu0 %v887
          %v889 = vpop.xlane.xlu0 %888
          %v890 = vrcp.pop %v889
          %v891 = vmul.f32 %v889, %v890
          %v892 = vsub.f32 1.0, %v891
          %v893 = vmul.f32 %v890, %v892
          %v894 = vadd.f32 %v890, %v893
          %vm895 = vweird.f32 %v889
          %vm896 = vweird.f32 %v890
          %vm897 = vmor %vm895, %vm896
          %v898 = vsel %vm897, %v890, %v894
          %v899 = vand.u32 2147483647, %v889
          %vm900 = vcmp.eq.f32.partialorder %v899, 8.507059e+37
          %v901 = vand.u32 %v889, 2147483648
          %v902 = vor.u32 1.1754944e-38, %v901
          %v903 = vsel %vm900, %v902, %v898
          %v904 = vmul.f32 %v886, %v903
          %906 = vrot.lane.b32.xlu0 %v767, 120
          %v907 = vpop.permute.xlu0 %906
          %v910 = vsel %vm775, %v904, 0
          %912 = vmatpush.msra.mxu0 0.0
          %913 = vmatpush.msra.mxu0 0.0
          %914 = vmatpush.msra.mxu0 0.0
          %915 = vmatpush.msra.mxu0 0.0
          %916 = vmatpush.msra.mxu0 0.0
          %917 = vmatpush.msra.mxu0 0.0
          %918 = vmatpush.msra.mxu0 0.0
          %919 = vmatpush.msra.mxu0 0.0
          %920 = vmatpush.msra.mxu0 0.0
          %921 = vmatpush.msra.mxu0 0.0
          %922 = vmatpush.msra.mxu0 0.0
          %923 = vmatpush.msra.mxu0 0.0
          %924 = vmatpush.msra.mxu0 0.0
          %925 = vmatpush.msra.mxu0 0.0
          %926 = vmatpush.msra.mxu0 0.0
          %927 = vmatpush.msra.mxu0 %v907
          %928 = vmatmul.f32.gmra.mxu0 %v910
          %v929 = vpop.f32.mrf.mxu0
          %v930 = vadd.f32 0.0, %v929
          %931 = vdwg.mxu0
          %932 = vrot.lane.b32.xlu0 %v711, 112
          %v933 = vpop.permute.xlu0 %932
          %934 = vrot.lane.b32.xlu0 %v739, 112
          %v935 = vpop.permute.xlu0 %934
          %v936 = vsel %vm775, %v933, 0
          %v938 = vsel %vm775, %v935, 0
          %940 = vmatpush.xpose.msra.mxu0 0.0
          %941 = vmatpush.xpose.msra.mxu0 0.0
          %942 = vmatpush.xpose.msra.mxu0 0.0
          %943 = vmatpush.xpose.msra.mxu0 0.0
          %944 = vmatpush.xpose.msra.mxu0 0.0
          %945 = vmatpush.xpose.msra.mxu0 0.0
          %946 = vmatpush.xpose.msra.mxu0 0.0
          %947 = vmatpush.xpose.msra.mxu0 0.0
          %948 = vmatpush.xpose.msra.mxu0 0.0
          %949 = vmatpush.xpose.msra.mxu0 0.0
          %950 = vmatpush.xpose.msra.mxu0 0.0
          %951 = vmatpush.xpose.msra.mxu0 0.0
          %952 = vmatpush.xpose.msra.mxu0 0.0
          %953 = vmatpush.xpose.msra.mxu0 0.0
          %954 = vmatpush.xpose.msra.mxu0 0.0
          %955 = vmatpush.xpose.msra.mxu0 %v938
          %956 = vmatmul.f32.gmra.mxu0 %v936
          %v957 = vpop.f32.mrf.mxu0
          %v958 = vadd.f32 0.0, %v957
          %959 = vdwg.mxu0
          %v960 = vmul.f32 %v958, 0.35355338
          %v961 = vadd.f32 %v960, %v774
          %v962 = vsel %vm775, %v961, -inf
          %963 = vmax.xlane.f32.xlu0 %v962
          %v964 = vpop.xlane.xlu0 %963
          %v965 = vsub.f32 %v961, %v964
          %v966 = vmul.f32 %v965, 1.442695
          %v967 = vpow.pop %v966
          %v968 = vsel %vm775, %v967, 0.0
          %969 = vadd.xlane.f32.xlu0 %v968
          %v970 = vpop.xlane.xlu0 %969
          %v971 = vrcp.pop %v970
          %v972 = vmul.f32 %v970, %v971
          %v973 = vsub.f32 1.0, %v972
          %v974 = vmul.f32 %v971, %v973
          %v975 = vadd.f32 %v971, %v974
          %vm976 = vweird.f32 %v970
          %vm977 = vweird.f32 %v971
          %vm978 = vmor %vm976, %vm977
          %v979 = vsel %vm978, %v971, %v975
          %v980 = vand.u32 2147483647, %v970
          %vm981 = vcmp.eq.f32.partialorder %v980, 8.507059e+37
          %v982 = vand.u32 %v970, 2147483648
          %v983 = vor.u32 1.1754944e-38, %v982
          %v984 = vsel %vm981, %v983, %v979
          %v985 = vmul.f32 %v967, %v984
          %986 = vrot.lane.b32.xlu0 %v767, 112
          %v987 = vpop.permute.xlu0 %986
          %v990 = vsel %vm775, %v985, 0
          %992 = vmatpush.msra.mxu0 0.0
          %993 = vmatpush.msra.mxu0 0.0
          %994 = vmatpush.msra.mxu0 0.0
          %995 = vmatpush.msra.mxu0 0.0
          %996 = vmatpush.msra.mxu0 0.0
          %997 = vmatpush.msra.mxu0 0.0
          %998 = vmatpush.msra.mxu0 0.0
          %999 = vmatpush.msra.mxu0 0.0
          %1000 = vmatpush.msra.mxu0 0.0
          %1001 = vmatpush.msra.mxu0 0.0
          %1002 = vmatpush.msra.mxu0 0.0
          %1003 = vmatpush.msra.mxu0 0.0
          %1004 = vmatpush.msra.mxu0 0.0
          %1005 = vmatpush.msra.mxu0 0.0
          %1006 = vmatpush.msra.mxu0 0.0
          %1007 = vmatpush.msra.mxu0 %v987
          %1008 = vmatmul.f32.gmra.mxu0 %v990
          %v1009 = vpop.f32.mrf.mxu0
          %v1010 = vadd.f32 0.0, %v1009
          %1011 = vdwg.mxu0
          %1012 = vrot.lane.b32.xlu0 %v711, 104
          %v1013 = vpop.permute.xlu0 %1012
          %1014 = vrot.lane.b32.xlu0 %v739, 104
          %v1015 = vpop.permute.xlu0 %1014
          %v1016 = vsel %vm775, %v1013, 0
          %v1018 = vsel %vm775, %v1015, 0
          %1020 = vmatpush.xpose.msra.mxu0 0.0
          %1021 = vmatpush.xpose.msra.mxu0 0.0
          %1022 = vmatpush.xpose.msra.mxu0 0.0
          %1023 = vmatpush.xpose.msra.mxu0 0.0
          %1024 = vmatpush.xpose.msra.mxu0 0.0
          %1025 = vmatpush.xpose.msra.mxu0 0.0
          %1026 = vmatpush.xpose.msra.mxu0 0.0
          %1027 = vmatpush.xpose.msra.mxu0 0.0
          %1028 = vmatpush.xpose.msra.mxu0 0.0
          %1029 = vmatpush.xpose.msra.mxu0 0.0
          %1030 = vmatpush.xpose.msra.mxu0 0.0
          %1031 = vmatpush.xpose.msra.mxu0 0.0
          %1032 = vmatpush.xpose.msra.mxu0 0.0
          %1033 = vmatpush.xpose.msra.mxu0 0.0
          %1034 = vmatpush.xpose.msra.mxu0 0.0
          %1035 = vmatpush.xpose.msra.mxu0 %v1018
          %1036 = vmatmul.f32.gmra.mxu0 %v1016
          %v1037 = vpop.f32.mrf.mxu0
          %v1038 = vadd.f32 0.0, %v1037
          %1039 = vdwg.mxu0
          %v1040 = vmul.f32 %v1038, 0.35355338
          %v1041 = vadd.f32 %v1040, %v774
          %v1042 = vsel %vm775, %v1041, -inf
          %1043 = vmax.xlane.f32.xlu0 %v1042
          %v1044 = vpop.xlane.xlu0 %1043
          %v1045 = vsub.f32 %v1041, %v1044
          %v1046 = vmul.f32 %v1045, 1.442695
          %v1047 = vpow.pop %v1046
          %v1048 = vsel %vm775, %v1047, 0.0
          %1049 = vadd.xlane.f32.xlu0 %v1048
          %v1050 = vpop.xlane.xlu0 %1049
          %v1051 = vrcp.pop %v1050
          %v1052 = vmul.f32 %v1050, %v1051
          %v1053 = vsub.f32 1.0, %v1052
          %v1054 = vmul.f32 %v1051, %v1053
          %v1055 = vadd.f32 %v1051, %v1054
          %vm1056 = vweird.f32 %v1050
          %vm1057 = vweird.f32 %v1051
          %vm1058 = vmor %vm1056, %vm1057
          %v1059 = vsel %vm1058, %v1051, %v1055
          %v1060 = vand.u32 2147483647, %v1050
          %vm1061 = vcmp.eq.f32.partialorder %v1060, 8.507059e+37
          %v1062 = vand.u32 %v1050, 2147483648
          %v1063 = vor.u32 1.1754944e-38, %v1062
          %v1064 = vsel %vm1061, %v1063, %v1059
          %v1065 = vmul.f32 %v1047, %v1064
          %1066 = vrot.lane.b32.xlu0 %v767, 104
          %v1067 = vpop.permute.xlu0 %1066
          %v1070 = vsel %vm775, %v1065, 0
          %1072 = vmatpush.msra.mxu0 0.0
          %1073 = vmatpush.msra.mxu0 0.0
          %1074 = vmatpush.msra.mxu0 0.0
          %1075 = vmatpush.msra.mxu0 0.0
          %1076 = vmatpush.msra.mxu0 0.0
          %1077 = vmatpush.msra.mxu0 0.0
          %1078 = vmatpush.msra.mxu0 0.0
          %1079 = vmatpush.msra.mxu0 0.0
          %1080 = vmatpush.msra.mxu0 0.0
          %1081 = vmatpush.msra.mxu0 0.0
          %1082 = vmatpush.msra.mxu0 0.0
          %1083 = vmatpush.msra.mxu0 0.0
          %1084 = vmatpush.msra.mxu0 0.0
          %1085 = vmatpush.msra.mxu0 0.0
          %1086 = vmatpush.msra.mxu0 0.0
          %1087 = vmatpush.msra.mxu0 %v1067
          %1088 = vmatmul.f32.gmra.mxu0 %v1070
          %v1089 = vpop.f32.mrf.mxu0
          %v1090 = vadd.f32 0.0, %v1089
          %1091 = vdwg.mxu0
          %1093 = vrot.lane.b32.xlu0 %v930, 8
          %v1094 = vpop.permute.xlu0 %1093
          %1097 = vrot.lane.b32.xlu0 %v1010, 16
          %v1098 = vpop.permute.xlu0 %1097
          %1101 = vrot.lane.b32.xlu0 %v1090, 24
          %v1102 = vpop.permute.xlu0 %1101
          %v1104 = vsel %vm775, %v849, %v1094
          %vm1105 = vcmask 130048
          %v1106 = vsel %vm1105, %v1104, %v1098
          %vm1107 = vcmask 195584
          %v1108 = vsel %vm1107, %v1106, %v1102
          %v1109 = vld [vmem:[%s11] sm:$0xff]
          %v1110 = vld [vmem:[%s11 + $0x8] sm:$0xff]
          %v1111 = vld [vmem:[%s11 + $0x10] sm:$0xff]
          %v1112 = vld [vmem:[%s11 + $0x18] sm:$0xff]
          %v1113 = vld [vmem:[%s12] sm:$0x1]
          %v1115 = vperm.slane %v1113, 0
          %v1118 = vsel %vm644, %v1108, 0
          %1120 = vmatpush.msra.mxu0 0.0
          %1121 = vmatpush.msra.mxu0 0.0
          %1122 = vmatpush.msra.mxu0 0.0
          %1123 = vmatpush.msra.mxu0 0.0
          %1124 = vmatpush.msra.mxu0 0.0
          %1125 = vmatpush.msra.mxu0 0.0
          %1126 = vmatpush.msra.mxu0 0.0
          %1127 = vmatpush.msra.mxu0 0.0
          %1128 = vmatpush.msra.mxu0 0.0
          %1129 = vmatpush.msra.mxu0 0.0
          %1130 = vmatpush.msra.mxu0 0.0
          %1131 = vmatpush.msra.mxu0 0.0
          %1132 = vmatpush.msra.mxu0 %v1112
          %1133 = vmatpush.msra.mxu0 %v1111
          %1134 = vmatpush.msra.mxu0 %v1110
          %1135 = vmatpush.msra.mxu0 %v1109
          %1136 = vmatmul.f32.gmra.mxu0 %v1118
          %v1137 = vpop.f32.mrf.mxu0
          %v1138 = vadd.f32 %v1115, %v1137
          %1139 = vdwg.mxu0
          %v1140 = vadd.f32 %v641, %v1138
          %v1141 = vld [vmem:[%s3] sm:$0x1]
          %v1142 = vld [vmem:[%s4] sm:$0x1]
          %v1143 = vsel %vm644, %v1140, 0.0
          %1144 = vadd.xlane.f32.xlu0 %v1143
          %v1145 = vpop.xlane.xlu0 %1144
          %v1146 = vmul.f32 %v1145, %v654
          %v1147 = vsub.f32 %v1140, %v1146
          %v1148 = vmul.f32 %v1147, %v1147
          %v1149 = vsel %vm644, %v1148, 0.0
          %1150 = vadd.xlane.f32.xlu0 %v1149
          %v1151 = vpop.xlane.xlu0 %1150
          %v1152 = vmul.f32 %v1151, %v654
          %v1153 = vadd.f32 %v1152, 1e-05
          %v1154 = vrsqrt.pop %v1153
          %v1155 = vmul.f32 %v1154, %v1153
          %v1156 = vmul.f32 %v1155, %v1154
          %v1157 = vmul.f32 0.5, %v1156
          %v1158 = vsub.f32 1.5, %v1157
          %v1159 = vmul.f32 %v1154, %v1158
          %vm1160 = vweird.f32 %v1153
          %vm1161 = vweird.f32 %v1154
          %vm1162 = vmor %vm1160, %vm1161
          %v1163 = vsel %vm1162, %v1154, %v1159
          %v1164 = vmul.f32 %v1147, %v1163
          %v1166 = vperm.slane %v1141, 0
          %v1168 = vmul.f32 %v1164, %v1166
          %v1170 = vperm.slane %v1142, 0
          %v1172 = vadd.f32 %v1168, %v1170
          %1173 = vst.msk [vmem:[#allocation2] sm:$0xff] %vm644, %v1172
          %1174 = vst.msk [vmem:[#allocation4] sm:$0xff] %vm644, %v1140
          %v1175 = vld [vmem:[%s13] sm:$0xff]
          %v1176 = vld [vmem:[%s13 + $0x8] sm:$0xff]
          %v1177 = vld [vmem:[%s13 + $0x10] sm:$0xff]
          %v1178 = vld [vmem:[%s13 + $0x18] sm:$0xff]
          %v1179 = vld [vmem:[%s14] sm:$0x1]
          %v1181 = vperm.slane %v1179, 0
          %v1184 = vsel %vm644, %v1172, 0
          %1186 = vmatpush.msra.mxu0 0.0
          %1187 = vmatpush.msra.mxu0 0.0
          %1188 = vmatpush.msra.mxu0 0.0
          %1189 = vmatpush.msra.mxu0 0.0
          %1190 = vmatpush.msra.mxu0 0.0
          %1191 = vmatpush.msra.mxu0 0.0
          %1192 = vmatpush.msra.mxu0 0.0
          %1193 = vmatpush.msra.mxu0 0.0
          %1194 = vmatpush.msra.mxu0 0.0
          %1195 = vmatpush.msra.mxu0 0.0
          %1196 = vmatpush.msra.mxu0 0.0
          %1197 = vmatpush.msra.mxu0 0.0
          %1198 = vmatpush.msra.mxu0 %v1178
          %1199 = vmatpush.msra.mxu0 %v1177
          %1200 = vmatpush.msra.mxu0 %v1176
          %1201 = vmatpush.msra.mxu0 %v1175
          %1202 = vmatmul.f32.gmra.mxu0 %v1184
          %v1203 = vpop.f32.mrf.mxu0
          %v1204 = vadd.f32 %v1181, %v1203
          %1205 = vdwg.mxu0
          %vm1206 = vcmask 31744
          %v1207 = vsel %vm1206, %v1204, -inf
          %1208 = vmax.xlane.f32.xlu0 %v1207
          %v1209 = vpop.xlane.xlu0 %1208
          %v1210 = vsub.f32 %v1204, %v1209
          %v1211 = vmul.f32 %v1210, 1.442695
          %v1212 = vpow.pop %v1211
          %v1213 = vsel %vm1206, %v1212, 0.0
          %1214 = vadd.xlane.f32.xlu0 %v1213
          %v1215 = vpop.xlane.xlu0 %1214
          %v1216 = vrcp.pop %v1215
          %v1217 = vmul.f32 %v1215, %v1216
          %v1218 = vsub.f32 1.0, %v1217
          %v1219 = vmul.f32 %v1216, %v1218
          %v1220 = vadd.f32 %v1216, %v1219
          %vm1221 = vweird.f32 %v1215
          %vm1222 = vweird.f32 %v1216
          %vm1223 = vmor %vm1221, %vm1222
          %v1224 = vsel %vm1223, %v1216, %v1220
          %v1225 = vand.u32 2147483647, %v1215
          %vm1226 = vcmp.eq.f32.partialorder %v1225, 8.507059e+37
          %v1227 = vand.u32 %v1215, 2147483648
          %v1228 = vor.u32 1.1754944e-38, %v1227
          %v1229 = vsel %vm1226, %v1228, %v1224
          %v1230 = vmul.f32 %v1212, %v1229
          %v1231 = vsel %vm1206, %v1230, -inf
          %1232 = vmax.xlane.f32.xlu0 %v1231
          %v1233 = vpop.xlane.xlu0 %1232
          %vm1234 = vcmp.eq.f32.partialorder %v1230, %v1233
          %v1235 = vsel %vm1234, %v772, 4
          %v1236 = vsel %vm1206, %v1235, 2147483647
          %v1237 = vand.u32 %v1236, 65535
          %v1238 = vshra.s32 %v1236, 16
          %v1239 = vcvt.s32.f32 %v1237
          %v1240 = vcvt.s32.f32 %v1238
          %1241 = vmin.xlane.f32.xlu0 %v1240
          %v1242 = vpop.xlane.xlu0 %1241
          %vm1243 = vcmp.eq.f32.partialorder %v1240, %v1242
          %v1244 = vsel %vm1243, %v1239, inf
          %1245 = vmin.xlane.f32.xlu0 %v1244
          %v1246 = vpop.xlane.xlu0 %1245
          %v1247 = vcvt.f32.s32 %v1246
          %v1248 = vcvt.f32.s32 %v1242
          %v1249 = vshll.u32 %v1248, 16
          %v1250 = vadd.s32 %v1249, %v1247
          %vm1251 = vcmp.eq.s32.totalorder %v772, %v1250
          %v1252 = vsel %vm1251, %v1230, 0.0
          %1253 = vst.msk [vmem:[#allocation3] sm:$0xff] %vm1206, %v1252
        $region100: #{tpu_custom_call.1} parent=95 // pred_fallthru
          _
        %v1254 = vld [vmem:[#allocation3] sm:$0xff]
        %v1255 = vlaneseq
        %v1256 = vand.u32 %v1255, 127
        %v1257 = vstv %s31
        %vm1258 = vcmp.eq.s32.totalorder %v1256, %v1257
        %v1259 = vsel %vm1258, %v1254, 0.0
        %vm1260 = vcmask 31744
        %v1261 = vsel %vm1260, %v1259, 0.0
        %1262 = vadd.xlane.f32.xlu0 %v1261
        %v1263 = vpop.xlane.xlu0 %1262
        %v1264 = vld [vmem:[#allocation2] sm:$0xff]
        %v1265 = vld [vmem:[%s625] sm:$0xff]
        %v1266 = vld [vmem:[%s625 + $0x8] sm:$0xff]
        %v1267 = vld [vmem:[%s625 + $0x10] sm:$0xff]
        %v1268 = vld [vmem:[%s625 + $0x18] sm:$0xff]
        %v1269 = vld [vmem:[%s628] sm:$0x1]
        %v1271 = vperm.slane %v1269, 0
        %vm1273 = vcmask 261120
        %v1275 = vsel %vm1273, %v1264, 0
        %1277 = vmatpush.msra.mxu0 0.0
        %1278 = vmatpush.msra.mxu0 0.0
        %1279 = vmatpush.msra.mxu0 0.0
        %1280 = vmatpush.msra.mxu0 0.0
        %1281 = vmatpush.msra.mxu0 0.0
        %1282 = vmatpush.msra.mxu0 0.0
        %1283 = vmatpush.msra.mxu0 0.0
        %1284 = vmatpush.msra.mxu0 0.0
        %1285 = vmatpush.msra.mxu0 0.0
        %1286 = vmatpush.msra.mxu0 0.0
        %1287 = vmatpush.msra.mxu0 0.0
        %1288 = vmatpush.msra.mxu0 0.0
        %1289 = vmatpush.msra.mxu0 %v1268
        %1290 = vmatpush.msra.mxu0 %v1267
        %1291 = vmatpush.msra.mxu0 %v1266
        %1292 = vmatpush.msra.mxu0 %v1265
        %1293 = vmatmul.f32.gmra.mxu0 %v1275
        %v1294 = vpop.f32.mrf.mxu0
        %v1295 = vadd.f32 %v1271, %v1294
        %1296 = vdwg.mxu0
        %v1297 = vmax.f32 %v1295, 0.0
        %v1298 = vld [vmem:[%s633] sm:$0xff]
        %v1299 = vld [vmem:[%s633 + $0x8] sm:$0xff]
        %v1300 = vld [vmem:[%s633 + $0x10] sm:$0xff]
        %v1301 = vld [vmem:[%s633 + $0x18] sm:$0xff]
        %v1302 = vld [vmem:[%s633 + $0x20] sm:$0xff]
        %v1303 = vld [vmem:[%s633 + $0x28] sm:$0xff]
        %v1304 = vld [vmem:[%s633 + $0x30] sm:$0xff]
        %v1305 = vld [vmem:[%s633 + $0x38] sm:$0xff]
        %v1306 = vld [vmem:[%s636] sm:$0x1]
        %v1308 = vperm.slane %v1306, 0
        %vm1310 = vcmask 523264
        %v1312 = vsel %vm1310, %v1297, 0
        %1314 = vmatpush.msra.mxu0 0.0
        %1315 = vmatpush.msra.mxu0 0.0
        %1316 = vmatpush.msra.mxu0 0.0
        %1317 = vmatpush.msra.mxu0 0.0
        %1318 = vmatpush.msra.mxu0 0.0
        %1319 = vmatpush.msra.mxu0 0.0
        %1320 = vmatpush.msra.mxu0 0.0
        %1321 = vmatpush.msra.mxu0 0.0
        %1322 = vmatpush.msra.mxu0 %v1305
        %1323 = vmatpush.msra.mxu0 %v1304
        %1324 = vmatpush.msra.mxu0 %v1303
        %1325 = vmatpush.msra.mxu0 %v1302
        %1326 = vmatpush.msra.mxu0 %v1301
        %1327 = vmatpush.msra.mxu0 %v1300
        %1328 = vmatpush.msra.mxu0 %v1299
        %1329 = vmatpush.msra.mxu0 %v1298
        %1330 = vmatmul.f32.gmra.mxu0 %v1312
        %v1331 = vpop.f32.mrf.mxu0
        %v1332 = vadd.f32 %v1308, %v1331
        %1333 = vdwg.mxu0
        %v1334 = vld [vmem:[#allocation4] sm:$0xff]
        %v1335 = vmul.f32 %v1263, %v1332
        %v1336 = vadd.f32 %v1334, %v1335
        %1337 = vst.msk [vmem:[#allocation4] sm:$0xff] %vm1273, %v1336
        %p1338 = scmp.eq.s32.totalorder %s31, 3
        // Predicated region
        $region101: #{tpu_custom_call.1} parent=95 // pred_check
          %p1339 = pneg %p1338
        $region102: #{tpu_custom_call.1} parent=95 // pred_check_branch
          %1341 = sbr.rel (%p1339) target = $region104
        $region103: #{tpu_custom_call.1} parent=95 // pred_region
          %v1342 = vld [vmem:[#allocation4] sm:$0xff]
          %1343 = vst.msk [vmem:[#allocation5] sm:$0xff] %vm1273, %v1342
        $region104: #{tpu_custom_call.1} parent=95 // pred_fallthru
          _
        // Predicated region
        $region105: #{tpu_custom_call.1} parent=95 // pred_check
          %p1344 = pneg %p463
        $region106: #{tpu_custom_call.1} parent=95 // pred_check_branch
          %1346 = sbr.rel (%p1344) target = $region108
        $region107: #{tpu_custom_call.1} parent=95 // pred_region
          %1348 = vsyncadd [#allocation6], 0
          %s1350 = sshll.u32 [#allocation5], 4
          %s1351 = int_to_ptr.vmem [resolvable:$true] %s1350
          %s1352 = sshll.u32 %s19, 4
          %s1353 = int_to_ptr.hbm [resolvable:$true] %s1352
          %1355 = dma.vmem_to_hbm [thread:$0]  %s1351, 128, %s1353, [#allocation6]
        $region108: #{tpu_custom_call.1} parent=95 // pred_fallthru
          _
        // Predicated region
        $region109: #{tpu_custom_call.1} parent=95 // pred_check
          %p1356 = pneg %p463
        $region110: #{tpu_custom_call.1} parent=95 // pred_check_branch
          %1358 = sbr.rel (%p1356) target = $region112
        $region111: #{tpu_custom_call.1} parent=95 // pred_region
          %1360 = dma.done [#allocation6], 128
        $region112: #{tpu_custom_call.1} parent=95 // pred_fallthru
          _
      $region96: #{tpu_custom_call.1} parent=5 // pred_fallthru
        _
      %p1361 = scmp.le.s32.totalorder 2, %s26
      // Predicated region
      $region113: #{tpu_custom_call.1} parent=5 // pred_check
        %p1362 = pneg %p1361
      $region114: #{tpu_custom_call.1} parent=5 // pred_check_branch
        %1364 = sbr.rel (%p1362) target = $region116
      $region115: #{tpu_custom_call.1} parent=5 // pred_region
        %s1365 = ssub.s32 %s26, 2
      $region116: #{tpu_custom_call.1} parent=5 // pred_fallthru
        _
    $region6: #{tpu_custom_call.1} parent=1 // loop_footer
      %s30 = sadd.s32 1, %s26
    $region7: #{tpu_custom_call.1} parent=1 // loop_footer_branch
      %25 = sbr.rel target = $region3
    $region8: #{tpu_custom_call.1} parent=1 // loop_exit
      _
    %1366 = vsyncpa [#allocation6], 1
    %s1367 = scalar_lea.sflag [#allocation6], 1
    %1368 = vsyncpa %s1367, 1

</llo_original>
